<compile_context>
chip_gen: v6e
topology: v6e:2x2x1
jax: 0.10.0
libtpu: 0.0.40
codegen_flags: <defaults>
</compile_context>

<pallas_src>
import functools
import math

import numpy as np
import jax
import jax.numpy as jnp
from jax.experimental import pallas as pl
from jax.experimental.pallas import tpu as pltpu


def _relu(v):
    return jnp.maximum(v, 0.0)


def _pan_block_kernel(x_ref, w1_ref, b1_ref, w2_ref, b2_ref, mask_ref, o_ref,
                      *, h, w, activation):
    """One grid step processes B_TILE images packed on the sublane axis.

    x_ref   : (R, HW)      R = B_TILE * C   (lane-dense activations)
    w1_ref  : (R, R)       block-diag BN1-folded 1x1 conv weights
    b1_ref  : (R, 1)
    w2_ref  : (R, 9*R)     block-diag-per-tap BN2-folded 3x3 conv weights
    b2_ref  : (R, 1)
    mask_ref: (9, HW)      3x3 boundary-validity masks
    """
    hw = h * w
    x = x_ref[...].astype(jnp.float32)
    w1 = w1_ref[...].astype(jnp.float32)
    b1 = b1_ref[...].astype(jnp.float32)
    w2 = w2_ref[...].astype(jnp.float32)
    b2 = b2_ref[...].astype(jnp.float32)
    masks = mask_ref[...].astype(jnp.float32)

    # ---- conv1 (1x1) + folded BN1 + activation: one MXU dot ----
    h1 = activation(
        jnp.dot(w1, x, preferred_element_type=jnp.float32,
                precision=jax.lax.Precision.HIGHEST) + b1)          # (R, HW)

    # ---- im2col: 9 lane rolls (XLU) + boundary masks -> (9*R, HW) stack ----
    # Tap (ky, kx) needs h1 at flat position p + s, s = (ky-1)*W + (kx-1);
    # the roll is per-row along the lane axis, so packing images on the
    # sublane axis is safe; the mask zeroes out-of-image / row-wrap pixels.
    taps = []
    for k in range(9):
        dy, dx = k // 3 - 1, k % 3 - 1
        s = dy * w + dx
        shifted = h1 if s == 0 else pltpu.roll(h1, shift=(-s) % hw, axis=1)
        taps.append(shifted * masks[k:k + 1, :])
    stack = jnp.concatenate(taps, axis=0)                           # (9*R, HW)

    # ---- conv2 (3x3, padding=1) + folded BN2: one MXU dot ----
    y = jnp.dot(w2, stack, preferred_element_type=jnp.float32,
                precision=jax.lax.Precision.HIGHEST) + b2           # (R, HW)

    # ---- residual add + activation ----
    o_ref[...] = activation(y + x).astype(o_ref.dtype)


def _fold_bn(conv_w, gamma, beta, mean, var, eps):
    """Fold inference-mode BatchNorm into the (bias-free) conv weight."""
    scale = gamma / jnp.sqrt(var + eps)                              # (c_out,)
    w_f = conv_w * scale.reshape(-1, *([1] * (conv_w.ndim - 1)))
    b_f = beta - mean * scale
    return w_f, b_f


def _tap_masks(h, w):
    """mask[k, p] = 1 if pixel p's (ky,kx) neighbour is inside the image."""
    hh, ww = np.meshgrid(np.arange(h), np.arange(w), indexing="ij")
    rows = []
    for k in range(9):
        dy, dx = k // 3 - 1, k % 3 - 1
        valid = ((hh + dy >= 0) & (hh + dy < h) &
                 (ww + dx >= 0) & (ww + dx < w))
        rows.append(valid.reshape(-1))
    return jnp.asarray(np.stack(rows).astype(np.float32))            # (9, h*w)


def _choose_batch_tile(n, c):
    """Images per grid step: smallest b with b*c % 8 == 0 and b | n, then
    grown while >=4 grid steps remain (v7x: two TensorCores, >=2 steps each)
    and the per-step sublane extent stays modest."""
    base = math.lcm(8, c) // c
    b = None
    for cand in range(base, n + 1, base):
        if n % cand == 0:
            b = cand
            break
    if b is None:
        # Can't reach a multiple of 8 with a divisor of n: process the whole
        # batch in one step (full-extent block is always layout-legal).
        return n
    while n % (2 * b) == 0 and (n // (2 * b)) >= 4 and 2 * b * c <= 256:
        b *= 2
    return b


def pan_block_forward(x, conv1_w, conv2_w, bn1, bn2, *,
                      activation=_relu, eps=1e-5):
    """x: (N, C, H, W); conv1_w: (C, C, 1, 1); conv2_w: (C, C, 3, 3);
    bn1/bn2 = (gamma, beta, running_mean, running_var)."""
    n, c_in, h, w = x.shape
    c_out = conv1_w.shape[0]
    assert c_in == c_out, "PANBlock residual add needs in_channels == out_channels"
    hw = h * w

    w1f, b1 = _fold_bn(conv1_w.reshape(c_out, c_in).astype(jnp.float32), *bn1, eps)
    w2f, b2 = _fold_bn(conv2_w.astype(jnp.float32), *bn2, eps)

    b_tile = _choose_batch_tile(n, c_in)
    rows = b_tile * c_in                       # sublane rows per grid step
    grid_len = n // b_tile

    # Block-diagonal packing so B_TILE images share one matmul per conv.
    eye = jnp.eye(b_tile, dtype=jnp.float32)
    w1bd = jnp.kron(eye, w1f)                                         # (R, R)
    w2bd = jnp.concatenate(
        [jnp.kron(eye, w2f[:, :, k // 3, k % 3]) for k in range(9)],
        axis=1)                                                       # (R, 9*R)
    b1t = jnp.tile(b1, b_tile).reshape(rows, 1)
    b2t = jnp.tile(b2, b_tile).reshape(rows, 1)
    masks = _tap_masks(h, w)

    # (N, C, H, W) -> (N*C, H*W): pure contiguous row-major reshape.
    x2 = x.reshape(n * c_in, hw)

    kernel = functools.partial(_pan_block_kernel, h=h, w=w, activation=activation)

    out2 = pl.pallas_call(
        kernel,
        out_shape=jax.ShapeDtypeStruct((n * c_out, hw), x.dtype),
        grid=(grid_len,),
        in_specs=[
            pl.BlockSpec((rows, hw), lambda i: (i, 0)),               # x (B_TILE images)
            pl.BlockSpec((rows, rows), lambda i: (0, 0)),             # W1 block-diag
            pl.BlockSpec((rows, 1), lambda i: (0, 0)),                # b1
            pl.BlockSpec((rows, 9 * rows), lambda i: (0, 0)),         # W2 block-diag packed
            pl.BlockSpec((rows, 1), lambda i: (0, 0)),                # b2
            pl.BlockSpec((9, hw), lambda i: (0, 0)),                  # 3x3 tap masks
        ],
        out_specs=pl.BlockSpec((rows, hw), lambda i: (i, 0)),
        compiler_params=pltpu.CompilerParams(
            dimension_semantics=("parallel",),
        ),
    )(x2, w1bd, b1t, w2bd, b2t, masks)

    return out2.reshape(n, c_out, h, w)


def _reference(x, conv1_w, conv2_w, bn1, bn2, *, activation=_relu, eps=1e-5):
    """Pure-JAX reference (lax convs + inference BN), f32 HIGHEST precision."""
    def bn(y, p):
        g, b, m, v = p
        s = g / jnp.sqrt(v + eps)
        return y * s[None, :, None, None] + (b - m * s)[None, :, None, None]

    dn = ("NCHW", "OIHW", "NCHW")
    y = jax.lax.conv_general_dilated(x, conv1_w, (1, 1), "VALID",
                                     dimension_numbers=dn,
                                     precision=jax.lax.Precision.HIGHEST)
    y = activation(bn(y, bn1))
    y = jax.lax.conv_general_dilated(y, conv2_w, (1, 1), ((1, 1), (1, 1)),
                                     dimension_numbers=dn,
                                     precision=jax.lax.Precision.HIGHEST)
    y = bn(y, bn2)
    return activation(y + x)


if __name__ == "__main__":
    key = jax.random.PRNGKey(0)
    ks = jax.random.split(key, 5)

    batch, channels, spatial = 2, 4, 16
    x = jax.random.normal(ks[0], (batch, channels, spatial, spatial),
                          dtype=jnp.float32)
    conv1_w = jax.random.normal(ks[1], (channels, channels, 1, 1),
                                dtype=jnp.float32) * 0.3
    conv2_w = jax.random.normal(ks[2], (channels, channels, 3, 3),
                                dtype=jnp.float32) * 0.1

    def bn_params(k):
        k1, k2, k3, k4 = jax.random.split(k, 4)
        gamma = 0.5 + jax.random.uniform(k1, (channels,), dtype=jnp.float32)
        beta = jax.random.normal(k2, (channels,), dtype=jnp.float32) * 0.1
        mean = jax.random.normal(k3, (channels,), dtype=jnp.float32) * 0.1
        var = 0.5 + jax.random.uniform(k4, (channels,), dtype=jnp.float32)
        return gamma, beta, mean, var

    bn1 = bn_params(ks[3])
    bn2 = bn_params(ks[4])

    out = pan_block_forward(x, conv1_w, conv2_w, bn1, bn2)
    out = jax.block_until_ready(out)

    ref = _reference(x, conv1_w, conv2_w, bn1, bn2)
    assert out.shape == (batch, channels, spatial, spatial)
    max_err = float(jnp.max(jnp.abs(out - ref)))
    assert jnp.allclose(out, ref, atol=1e-4, rtol=1e-4), max_err

    print("KERNEL_OK")
</pallas_src>

<mosaic_0001>
module attributes {stable_mosaic.version = 11 : i64} {
  func.func @_pan_block_kernel(%arg0: i32, %arg1: memref<8x256xf32, #tpu.memory_space<vmem>>, %arg2: memref<8x8xf32, #tpu.memory_space<vmem>>, %arg3: memref<8x1xf32, #tpu.memory_space<vmem>>, %arg4: memref<8x72xf32, #tpu.memory_space<vmem>>, %arg5: memref<8x1xf32, #tpu.memory_space<vmem>>, %arg6: memref<9x256xf32, #tpu.memory_space<vmem>>, %arg7: memref<8x256xf32, #tpu.memory_space<vmem>>) attributes {dimension_semantics = [#tpu.dimension_semantics<parallel>], iteration_bounds = array<i64: 1>, scalar_prefetch = 0 : i64, scratch_operands = 0 : i64, tpu.core_type = #tpu.core_type<tc>, window_params = [{transform_indices = @transform_0, window_bounds = array<i64: 8, 256>}, {pipeline_mode = #tpu.pipeline_mode<synchronous>, transform_indices = @transform_1, window_bounds = array<i64: 8, 8>}, {pipeline_mode = #tpu.pipeline_mode<synchronous>, transform_indices = @transform_2, window_bounds = array<i64: 8, 1>}, {pipeline_mode = #tpu.pipeline_mode<synchronous>, transform_indices = @transform_3, window_bounds = array<i64: 8, 72>}, {pipeline_mode = #tpu.pipeline_mode<synchronous>, transform_indices = @transform_4, window_bounds = array<i64: 8, 1>}, {pipeline_mode = #tpu.pipeline_mode<synchronous>, transform_indices = @transform_5, window_bounds = array<i64: 9, 256>}, {transform_indices = @transform_6, window_bounds = array<i64: 8, 256>}]} {
    %c0 = arith.constant 0 : index
    %c0_0 = arith.constant 0 : index
    %0 = vector.load %arg1[%c0, %c0_0] : memref<8x256xf32, #tpu.memory_space<vmem>>, vector<8x256xf32>
    %c0_1 = arith.constant 0 : index
    %c0_2 = arith.constant 0 : index
    %1 = vector.load %arg2[%c0_1, %c0_2] : memref<8x8xf32, #tpu.memory_space<vmem>>, vector<8x8xf32>
    %c0_3 = arith.constant 0 : index
    %c0_4 = arith.constant 0 : index
    %2 = vector.load %arg3[%c0_3, %c0_4] : memref<8x1xf32, #tpu.memory_space<vmem>>, vector<8x1xf32>
    %c0_5 = arith.constant 0 : index
    %c0_6 = arith.constant 0 : index
    %3 = vector.load %arg4[%c0_5, %c0_6] : memref<8x72xf32, #tpu.memory_space<vmem>>, vector<8x72xf32>
    %c0_7 = arith.constant 0 : index
    %c0_8 = arith.constant 0 : index
    %4 = vector.load %arg5[%c0_7, %c0_8] : memref<8x1xf32, #tpu.memory_space<vmem>>, vector<8x1xf32>
    %c0_9 = arith.constant 0 : index
    %c0_10 = arith.constant 0 : index
    %5 = vector.load %arg6[%c0_9, %c0_10] : memref<9x256xf32, #tpu.memory_space<vmem>>, vector<9x256xf32>
    %cst = arith.constant dense<0.000000e+00> : vector<8x256xf32>
    %6 = tpu.matmul %1, %0, %cst {dimension_numbers = #tpu.dot_dimension_numbers<[1], [0], [0], [1], [0, 0, 1, 1], [], []>, precision = #tpu.contract_precision<fp32>} : vector<8x8xf32>, vector<8x256xf32>, vector<8x256xf32> -> vector<8x256xf32>
    %7 = vector.broadcast %2 : vector<8x1xf32> to vector<8x256xf32>
    %8 = arith.addf %6, %7 : vector<8x256xf32>
    %cst_11 = arith.constant 0.000000e+00 : f32
    %9 = vector.broadcast %cst_11 : f32 to vector<8x256xf32>
    %10 = arith.maximumf %8, %9 : vector<8x256xf32>
    %c17_i32 = arith.constant 17 : i32
    %11 = tpu.dynamic_rotate %10 by %c17_i32 dim 1 : vector<8x256xf32>, i32 -> vector<8x256xf32>
    %12 = vector.extract_strided_slice %5 {offsets = [0, 0], sizes = [1, 256], strides = [1, 1]} : vector<9x256xf32> to vector<1x256xf32>
    %13 = vector.broadcast %12 : vector<1x256xf32> to vector<8x256xf32>
    %14 = arith.mulf %11, %13 : vector<8x256xf32>
    %c16_i32 = arith.constant 16 : i32
    %15 = tpu.dynamic_rotate %10 by %c16_i32 dim 1 : vector<8x256xf32>, i32 -> vector<8x256xf32>
    %16 = vector.extract_strided_slice %5 {offsets = [1, 0], sizes = [1, 256], strides = [1, 1]} : vector<9x256xf32> to vector<1x256xf32>
    %17 = vector.broadcast %16 : vector<1x256xf32> to vector<8x256xf32>
    %18 = arith.mulf %15, %17 : vector<8x256xf32>
    %c15_i32 = arith.constant 15 : i32
    %19 = tpu.dynamic_rotate %10 by %c15_i32 dim 1 : vector<8x256xf32>, i32 -> vector<8x256xf32>
    %20 = vector.extract_strided_slice %5 {offsets = [2, 0], sizes = [1, 256], strides = [1, 1]} : vector<9x256xf32> to vector<1x256xf32>
    %21 = vector.broadcast %20 : vector<1x256xf32> to vector<8x256xf32>
    %22 = arith.mulf %19, %21 : vector<8x256xf32>
    %c1_i32 = arith.constant 1 : i32
    %23 = tpu.dynamic_rotate %10 by %c1_i32 dim 1 : vector<8x256xf32>, i32 -> vector<8x256xf32>
    %24 = vector.extract_strided_slice %5 {offsets = [3, 0], sizes = [1, 256], strides = [1, 1]} : vector<9x256xf32> to vector<1x256xf32>
    %25 = vector.broadcast %24 : vector<1x256xf32> to vector<8x256xf32>
    %26 = arith.mulf %23, %25 : vector<8x256xf32>
    %27 = vector.extract_strided_slice %5 {offsets = [4, 0], sizes = [1, 256], strides = [1, 1]} : vector<9x256xf32> to vector<1x256xf32>
    %28 = vector.broadcast %27 : vector<1x256xf32> to vector<8x256xf32>
    %29 = arith.mulf %10, %28 : vector<8x256xf32>
    %c255_i32 = arith.constant 255 : i32
    %30 = tpu.dynamic_rotate %10 by %c255_i32 dim 1 : vector<8x256xf32>, i32 -> vector<8x256xf32>
    %31 = vector.extract_strided_slice %5 {offsets = [5, 0], sizes = [1, 256], strides = [1, 1]} : vector<9x256xf32> to vector<1x256xf32>
    %32 = vector.broadcast %31 : vector<1x256xf32> to vector<8x256xf32>
    %33 = arith.mulf %30, %32 : vector<8x256xf32>
    %c241_i32 = arith.constant 241 : i32
    %34 = tpu.dynamic_rotate %10 by %c241_i32 dim 1 : vector<8x256xf32>, i32 -> vector<8x256xf32>
    %35 = vector.extract_strided_slice %5 {offsets = [6, 0], sizes = [1, 256], strides = [1, 1]} : vector<9x256xf32> to vector<1x256xf32>
    %36 = vector.broadcast %35 : vector<1x256xf32> to vector<8x256xf32>
    %37 = arith.mulf %34, %36 : vector<8x256xf32>
    %c240_i32 = arith.constant 240 : i32
    %38 = tpu.dynamic_rotate %10 by %c240_i32 dim 1 : vector<8x256xf32>, i32 -> vector<8x256xf32>
    %39 = vector.extract_strided_slice %5 {offsets = [7, 0], sizes = [1, 256], strides = [1, 1]} : vector<9x256xf32> to vector<1x256xf32>
    %40 = vector.broadcast %39 : vector<1x256xf32> to vector<8x256xf32>
    %41 = arith.mulf %38, %40 : vector<8x256xf32>
    %c239_i32 = arith.constant 239 : i32
    %42 = tpu.dynamic_rotate %10 by %c239_i32 dim 1 : vector<8x256xf32>, i32 -> vector<8x256xf32>
    %43 = vector.extract_strided_slice %5 {offsets = [8, 0], sizes = [1, 256], strides = [1, 1]} : vector<9x256xf32> to vector<1x256xf32>
    %44 = vector.broadcast %43 : vector<1x256xf32> to vector<8x256xf32>
    %45 = arith.mulf %42, %44 : vector<8x256xf32>
    %46 = tpu.concatenate %14, %18, %22, %26, %29, %33, %37, %41, %45 in 0 : vector<8x256xf32>, vector<8x256xf32>, vector<8x256xf32>, vector<8x256xf32>, vector<8x256xf32>, vector<8x256xf32>, vector<8x256xf32>, vector<8x256xf32>, vector<8x256xf32> -> vector<72x256xf32>
    %cst_12 = arith.constant dense<0.000000e+00> : vector<8x256xf32>
    %47 = tpu.matmul %3, %46, %cst_12 {dimension_numbers = #tpu.dot_dimension_numbers<[1], [0], [0], [1], [0, 0, 1, 1], [], []>, precision = #tpu.contract_precision<fp32>} : vector<8x72xf32>, vector<72x256xf32>, vector<8x256xf32> -> vector<8x256xf32>
    %48 = vector.broadcast %4 : vector<8x1xf32> to vector<8x256xf32>
    %49 = arith.addf %47, %48 : vector<8x256xf32>
    %50 = arith.addf %49, %0 : vector<8x256xf32>
    %cst_13 = arith.constant 0.000000e+00 : f32
    %51 = vector.broadcast %cst_13 : f32 to vector<8x256xf32>
    %52 = arith.maximumf %50, %51 : vector<8x256xf32>
    %c0_14 = arith.constant 0 : index
    %c0_15 = arith.constant 0 : index
    %53 = vector.load %arg7[%c0_14, %c0_15] : memref<8x256xf32, #tpu.memory_space<vmem>>, vector<8x256xf32>
    tpu.vector_store %arg7[%c0_14, %c0_15], %52 {strides = array<i32>} : memref<8x256xf32, #tpu.memory_space<vmem>>, vector<8x256xf32>,
    return
  }
  func.func @transform_0(%arg0: i32) -> (i32, i32) {
    %c0_i32 = arith.constant 0 : i32
    %c0_i32_0 = arith.constant 0 : i32
    return %arg0, %c0_i32 : i32, i32
  }
  func.func @transform_1(%arg0: i32) -> (i32, i32) {
    %c0_i32 = arith.constant 0 : i32
    %c0_i32_0 = arith.constant 0 : i32
    %c0_i32_1 = arith.constant 0 : i32
    return %c0_i32, %c0_i32_0 : i32, i32
  }
  func.func @transform_2(%arg0: i32) -> (i32, i32) {
    %c0_i32 = arith.constant 0 : i32
    %c0_i32_0 = arith.constant 0 : i32
    %c0_i32_1 = arith.constant 0 : i32
    return %c0_i32, %c0_i32_0 : i32, i32
  }
  func.func @transform_3(%arg0: i32) -> (i32, i32) {
    %c0_i32 = arith.constant 0 : i32
    %c0_i32_0 = arith.constant 0 : i32
    %c0_i32_1 = arith.constant 0 : i32
    return %c0_i32, %c0_i32_0 : i32, i32
  }
  func.func @transform_4(%arg0: i32) -> (i32, i32) {
    %c0_i32 = arith.constant 0 : i32
    %c0_i32_0 = arith.constant 0 : i32
    %c0_i32_1 = arith.constant 0 : i32
    return %c0_i32, %c0_i32_0 : i32, i32
  }
  func.func @transform_5(%arg0: i32) -> (i32, i32) {
    %c0_i32 = arith.constant 0 : i32
    %c0_i32_0 = arith.constant 0 : i32
    %c0_i32_1 = arith.constant 0 : i32
    return %c0_i32, %c0_i32_0 : i32, i32
  }
  func.func @transform_6(%arg0: i32) -> (i32, i32) {
    %c0_i32 = arith.constant 0 : i32
    %c0_i32_0 = arith.constant 0 : i32
    return %arg0, %c0_i32 : i32, i32
  }
}

</mosaic_0001>

<llo_original>
// kernel: tpu_custom_call.1
$region0: #{tpu_custom_call.1}
  #allocation0 [shape = 'u32[]', space=smem, size = 0x4, offset = 0x4, fixed_abs, tag = 'smem constant byte address 0x4 - core index']
  #allocation1 [shape = 'u32[144,128]{1,0:T(1,128)}', space=vmem, size = 0x12000, scoped, tag = 'internal scratch']
  %s0 = inlined_call_operand.vmem [shape: f32[8,256], index: 0, kind: input, shape index: {}]
  %s1 = inlined_call_operand.hbm [shape: f32[8,8], index: 1, kind: input, shape index: {}]
  %s2 = inlined_call_operand.vmem [shape: f32[8,1], index: 2, kind: input, shape index: {}]
  %s3 = inlined_call_operand.hbm [shape: f32[8,72], index: 3, kind: input, shape index: {}]
  %s4 = inlined_call_operand.vmem [shape: f32[8,1], index: 4, kind: input, shape index: {}]
  %s5 = inlined_call_operand.hbm [shape: f32[9,256], index: 5, kind: input, shape index: {}]
  %s6 = inlined_call_operand.hbm [shape: f32[8,256], index: 6, kind: output, shape index: {}]
  %s7 = sld [smem:[#allocation0]]
  $region46: #{tpu_custom_call.1} parent=0
    _
  %s9 = ssub.s32 1, %s7
  %s10 = scalar_select 0, %s9, %s7
  $region1: #{tpu_custom_call.1} parent=0
    #allocation2 [shape = 'u8[4096]{0}', space=vmem, size = 0x1000, scoped, tag = 'input window, operand 1, single buffered']
    #allocation3 [shape = 's32[1]{0}', space=sflag, size = 0x4, scoped, tag = 'scoped memory for tpu_custom_call.1']
    #allocation4 [shape = 's32[1]{0}', space=sflag, size = 0x4, scoped, tag = 'scoped memory for tpu_custom_call.1']
    #allocation5 [shape = 'u8[4096]{0}', space=vmem, size = 0x1000, scoped, tag = 'input window, operand 3, single buffered']
    #allocation6 [shape = 's32[1]{0}', space=sflag, size = 0x4, scoped, tag = 'scoped memory for tpu_custom_call.1']
    #allocation7 [shape = 'u8[16384]{0}', space=vmem, size = 0x4000, scoped, tag = 'input window, operand 5, single buffered']
    #allocation8 [shape = 'u8[8192]{0}', space=vmem, size = 0x2000, scoped, tag = 'output window, operand 0, single buffered']
    %11 = vsyncpa [#allocation3], 0
    %12 = vsyncpa [#allocation6], 0
    %13 = vsyncpa [#allocation4], 0
    // Predicated region
    $region2: #{tpu_custom_call.1} parent=1 // pred_check
      _
    $region3: #{tpu_custom_call.1} parent=1 // pred_check_branch
      %15 = sbr.rel (0) target = $region5
    $region4: #{tpu_custom_call.1} parent=1 // pred_region
      _
    $region5: #{tpu_custom_call.1} parent=1 // pred_fallthru
      _
    // Predicated region
    $region6: #{tpu_custom_call.1} parent=1 // pred_check
      _
    $region7: #{tpu_custom_call.1} parent=1 // pred_check_branch
      %17 = sbr.rel (0) target = $region9
    $region8: #{tpu_custom_call.1} parent=1 // pred_region
      %s19 = ssub.s32 128, 128
      %20 = vsyncadd [#allocation3], %s19
      %s22 = sshll.u32 [#allocation2], 4
      %s23 = int_to_ptr.vmem [resolvable:$true] %s22
      %25 = dma.hbm_to_vmem [thread:$0]  %s1, 128, %s23, [#allocation3]
    $region9: #{tpu_custom_call.1} parent=1 // pred_fallthru
      _
    // Predicated region
    $region10: #{tpu_custom_call.1} parent=1 // pred_check
      _
    $region11: #{tpu_custom_call.1} parent=1 // pred_check_branch
      %27 = sbr.rel (0) target = $region13
    $region12: #{tpu_custom_call.1} parent=1 // pred_region
      _
    $region13: #{tpu_custom_call.1} parent=1 // pred_fallthru
      _
    // Predicated region
    $region14: #{tpu_custom_call.1} parent=1 // pred_check
      _
    $region15: #{tpu_custom_call.1} parent=1 // pred_check_branch
      %29 = sbr.rel (0) target = $region17
    $region16: #{tpu_custom_call.1} parent=1 // pred_region
      %s31 = ssub.s32 128, 128
      %32 = vsyncadd [#allocation6], %s31
      %s34 = sshll.u32 [#allocation5], 4
      %s35 = int_to_ptr.vmem [resolvable:$true] %s34
      %37 = dma.hbm_to_vmem [thread:$0]  %s3, 128, %s35, [#allocation6]
    $region17: #{tpu_custom_call.1} parent=1 // pred_fallthru
      _
    // Predicated region
    $region18: #{tpu_custom_call.1} parent=1 // pred_check
      _
    $region19: #{tpu_custom_call.1} parent=1 // pred_check_branch
      %39 = sbr.rel (0) target = $region21
    $region20: #{tpu_custom_call.1} parent=1 // pred_region
      _
    $region21: #{tpu_custom_call.1} parent=1 // pred_fallthru
      _
    // Predicated region
    $region22: #{tpu_custom_call.1} parent=1 // pred_check
      _
    $region23: #{tpu_custom_call.1} parent=1 // pred_check_branch
      %41 = sbr.rel (0) target = $region25
    $region24: #{tpu_custom_call.1} parent=1 // pred_region
      %s43 = ssub.s32 512, 512
      %44 = vsyncadd [#allocation6], %s43
      %s45 = sshll.u32 [#allocation7], 4
      %s46 = int_to_ptr.vmem [resolvable:$true] %s45
      %51 = dma.hbm_to_vmem [thread:$0]  %s5, 512, %s46, [#allocation6], 256, 256, 16
    $region25: #{tpu_custom_call.1} parent=1 // pred_fallthru
      _
    // Predicated region
    $region26: #{tpu_custom_call.1} parent=1 // pred_check
      _
    $region27: #{tpu_custom_call.1} parent=1 // pred_check_branch
      %53 = sbr.rel (0) target = $region29
    $region28: #{tpu_custom_call.1} parent=1 // pred_region
      %54 = dma.done [#allocation3], 128
    $region29: #{tpu_custom_call.1} parent=1 // pred_fallthru
      _
    // Predicated region
    $region30: #{tpu_custom_call.1} parent=1 // pred_check
      _
    $region31: #{tpu_custom_call.1} parent=1 // pred_check_branch
      %56 = sbr.rel (0) target = $region33
    $region32: #{tpu_custom_call.1} parent=1 // pred_region
      %57 = dma.done [#allocation6], 128
    $region33: #{tpu_custom_call.1} parent=1 // pred_fallthru
      _
    // Predicated region
    $region34: #{tpu_custom_call.1} parent=1 // pred_check
      _
    $region35: #{tpu_custom_call.1} parent=1 // pred_check_branch
      %59 = sbr.rel (0) target = $region37
    $region36: #{tpu_custom_call.1} parent=1 // pred_region
      %60 = dma.done [#allocation6], 512
    $region37: #{tpu_custom_call.1} parent=1 // pred_fallthru
      _
    %v61 = vld [vmem:[%s0] sm:$0xff]
    %v62 = vld [vmem:[%s0 + $0x8] sm:$0xff]
    %v63 = vld [vmem:[#allocation2] sm:$0xff]
    %v64 = vld [vmem:[%s2] sm:$0xff]
    %v65 = vld [vmem:[#allocation5] sm:$0xff]
    %v66 = vld [vmem:[%s4] sm:$0xff]
    %v67 = vld [vmem:[#allocation7] sm:$0xff]
    %v68 = vld [vmem:[#allocation7 + $0x8] sm:$0xff]
    %v69 = vld [vmem:[#allocation7 + $0x10] sm:$0x1]
    %v70 = vld [vmem:[#allocation7 + $0x18] sm:$0x1]
    %72 = vset.pattern.permute.xlu0 0
    %73 = vperm.xlu0 %72, %v64
    %v74 = vpop.permute.xlu0 %73
    %vm76 = vcmask 64512
    %v78 = vsel %vm76, %v63, 0
    %80 = vmatprep.subr.mxu0 0.0
    %81 = vmatpush1.msra.mxu0 0.0
    %82 = vmatprep.subr.mxu0 0.0
    %83 = vmatpush1.msra.mxu0 0.0
    %84 = vmatprep.subr.mxu0 0.0
    %85 = vmatpush1.msra.mxu0 0.0
    %86 = vmatprep.subr.mxu0 0.0
    %87 = vmatpush1.msra.mxu0 0.0
    %88 = vmatprep.subr.mxu0 0.0
    %89 = vmatpush1.msra.mxu0 0.0
    %90 = vmatprep.subr.mxu0 0.0
    %91 = vmatpush1.msra.mxu0 0.0
    %92 = vmatprep.subr.mxu0 0.0
    %93 = vmatpush1.msra.mxu0 0.0
    %94 = vmatprep.subr.mxu0 0.0
    %95 = vmatpush1.msra.mxu0 0.0
    %96 = vmatprep.subr.mxu0 0.0
    %97 = vmatpush1.msra.mxu0 0.0
    %98 = vmatprep.subr.mxu0 0.0
    %99 = vmatpush1.msra.mxu0 0.0
    %100 = vmatprep.subr.mxu0 0.0
    %101 = vmatpush1.msra.mxu0 0.0
    %102 = vmatprep.subr.mxu0 0.0
    %103 = vmatpush1.msra.mxu0 0.0
    %104 = vmatprep.subr.mxu0 0.0
    %105 = vmatpush1.msra.mxu0 0.0
    %106 = vmatprep.subr.mxu0 0.0
    %107 = vmatpush1.msra.mxu0 0.0
    %108 = vmatprep.subr.mxu0 0.0
    %109 = vmatpush1.msra.mxu0 0.0
    %v110 = vand.u32 %v62, 4294901760
    %111 = vmatprep.subr.mxu0 %v110
    %v112 = vand.u32 %v61, 4294901760
    %113 = vmatpush1.msra.mxu0 %v112
    %114 = vmatprep.subr.mxu0 0.0
    %115 = vmatpush2.msra.mxu0 0.0
    %116 = vmatprep.subr.mxu0 0.0
    %117 = vmatpush2.msra.mxu0 0.0
    %118 = vmatprep.subr.mxu0 0.0
    %119 = vmatpush2.msra.mxu0 0.0
    %120 = vmatprep.subr.mxu0 0.0
    %121 = vmatpush2.msra.mxu0 0.0
    %122 = vmatprep.subr.mxu0 0.0
    %123 = vmatpush2.msra.mxu0 0.0
    %124 = vmatprep.subr.mxu0 0.0
    %125 = vmatpush2.msra.mxu0 0.0
    %126 = vmatprep.subr.mxu0 0.0
    %127 = vmatpush2.msra.mxu0 0.0
    %128 = vmatprep.subr.mxu0 0.0
    %129 = vmatpush2.msra.mxu0 0.0
    %130 = vmatprep.subr.mxu0 0.0
    %131 = vmatpush2.msra.mxu0 0.0
    %132 = vmatprep.subr.mxu0 0.0
    %133 = vmatpush2.msra.mxu0 0.0
    %134 = vmatprep.subr.mxu0 0.0
    %135 = vmatpush2.msra.mxu0 0.0
    %136 = vmatprep.subr.mxu0 0.0
    %137 = vmatpush2.msra.mxu0 0.0
    %138 = vmatprep.subr.mxu0 0.0
    %139 = vmatpush2.msra.mxu0 0.0
    %140 = vmatprep.subr.mxu0 0.0
    %141 = vmatpush2.msra.mxu0 0.0
    %142 = vmatprep.subr.mxu0 0.0
    %143 = vmatpush2.msra.mxu0 0.0
    %144 = vmatprep.subr.mxu0 0.0
    %145 = vmatpush2.msra.mxu0 0.0
    %146 = vmatprep.mubr.f32.mxu0 0.0
    %v147 = vand.u32 %v78, 4294901760
    %v148 = vsub.f32 %v78, %v147
    %v149 = vand.u32 %v148, 4294901760
    %v150 = vsub.f32 %v148, %v149
    %v151 = vand.u32 %v150, 4294901760
    %152 = vmatmul.mubr.f32.gmra.mxu0 %v151
    %v153 = vpop.f32.mrf.mxu0
    %v154 = vadd.f32 %v74, %v153
    %v155 = vpop.f32.mrf.mxu0
    %v156 = vadd.f32 %v74, %v155
    %157 = vdwg.mxu0
    %158 = vmatprep.subr.mxu0 0.0
    %159 = vmatpush1.msra.mxu0 0.0
    %160 = vmatprep.subr.mxu0 0.0
    %161 = vmatpush1.msra.mxu0 0.0
    %162 = vmatprep.subr.mxu0 0.0
    %163 = vmatpush1.msra.mxu0 0.0
    %164 = vmatprep.subr.mxu0 0.0
    %165 = vmatpush1.msra.mxu0 0.0
    %166 = vmatprep.subr.mxu0 0.0
    %167 = vmatpush1.msra.mxu0 0.0
    %168 = vmatprep.subr.mxu0 0.0
    %169 = vmatpush1.msra.mxu0 0.0
    %170 = vmatprep.subr.mxu0 0.0
    %171 = vmatpush1.msra.mxu0 0.0
    %172 = vmatprep.subr.mxu0 0.0
    %173 = vmatpush1.msra.mxu0 0.0
    %174 = vmatprep.subr.mxu0 0.0
    %175 = vmatpush1.msra.mxu0 0.0
    %176 = vmatprep.subr.mxu0 0.0
    %177 = vmatpush1.msra.mxu0 0.0
    %178 = vmatprep.subr.mxu0 0.0
    %179 = vmatpush1.msra.mxu0 0.0
    %180 = vmatprep.subr.mxu0 0.0
    %181 = vmatpush1.msra.mxu0 0.0
    %182 = vmatprep.subr.mxu0 0.0
    %183 = vmatpush1.msra.mxu0 0.0
    %184 = vmatprep.subr.mxu0 0.0
    %185 = vmatpush1.msra.mxu0 0.0
    %186 = vmatprep.subr.mxu0 0.0
    %187 = vmatpush1.msra.mxu0 0.0
    %v188 = vand.u32 %v62, 4294901760
    %v189 = vsub.f32 %v62, %v188
    %v190 = vand.u32 %v189, 4294901760
    %v191 = vsub.f32 %v189, %v190
    %v192 = vand.u32 %v191, 4294901760
    %193 = vmatprep.subr.mxu0 %v192
    %v194 = vand.u32 %v61, 4294901760
    %v195 = vsub.f32 %v61, %v194
    %v196 = vand.u32 %v195, 4294901760
    %v197 = vsub.f32 %v195, %v196
    %v198 = vand.u32 %v197, 4294901760
    %199 = vmatpush1.msra.mxu0 %v198
    %200 = vmatprep.subr.mxu0 0.0
    %201 = vmatpush2.msra.mxu0 0.0
    %202 = vmatprep.subr.mxu0 0.0
    %203 = vmatpush2.msra.mxu0 0.0
    %204 = vmatprep.subr.mxu0 0.0
    %205 = vmatpush2.msra.mxu0 0.0
    %206 = vmatprep.subr.mxu0 0.0
    %207 = vmatpush2.msra.mxu0 0.0
    %208 = vmatprep.subr.mxu0 0.0
    %209 = vmatpush2.msra.mxu0 0.0
    %210 = vmatprep.subr.mxu0 0.0
    %211 = vmatpush2.msra.mxu0 0.0
    %212 = vmatprep.subr.mxu0 0.0
    %213 = vmatpush2.msra.mxu0 0.0
    %214 = vmatprep.subr.mxu0 0.0
    %215 = vmatpush2.msra.mxu0 0.0
    %216 = vmatprep.subr.mxu0 0.0
    %217 = vmatpush2.msra.mxu0 0.0
    %218 = vmatprep.subr.mxu0 0.0
    %219 = vmatpush2.msra.mxu0 0.0
    %220 = vmatprep.subr.mxu0 0.0
    %221 = vmatpush2.msra.mxu0 0.0
    %222 = vmatprep.subr.mxu0 0.0
    %223 = vmatpush2.msra.mxu0 0.0
    %224 = vmatprep.subr.mxu0 0.0
    %225 = vmatpush2.msra.mxu0 0.0
    %226 = vmatprep.subr.mxu0 0.0
    %227 = vmatpush2.msra.mxu0 0.0
    %228 = vmatprep.subr.mxu0 0.0
    %229 = vmatpush2.msra.mxu0 0.0
    %230 = vmatprep.subr.mxu0 0.0
    %231 = vmatpush2.msra.mxu0 0.0
    %232 = vmatprep.mubr.f32.mxu0 0.0
    %v233 = vand.u32 %v78, 4294901760
    %234 = vmatmul.mubr.f32.gmra.mxu0 %v233
    %v235 = vpop.f32.mrf.mxu0
    %v236 = vadd.f32 %v154, %v235
    %v237 = vpop.f32.mrf.mxu0
    %v238 = vadd.f32 %v156, %v237
    %239 = vdwg.mxu0
    %240 = vmatprep.subr.mxu0 0.0
    %241 = vmatpush1.msra.mxu0 0.0
    %242 = vmatprep.subr.mxu0 0.0
    %243 = vmatpush1.msra.mxu0 0.0
    %244 = vmatprep.subr.mxu0 0.0
    %245 = vmatpush1.msra.mxu0 0.0
    %246 = vmatprep.subr.mxu0 0.0
    %247 = vmatpush1.msra.mxu0 0.0
    %248 = vmatprep.subr.mxu0 0.0
    %249 = vmatpush1.msra.mxu0 0.0
    %250 = vmatprep.subr.mxu0 0.0
    %251 = vmatpush1.msra.mxu0 0.0
    %252 = vmatprep.subr.mxu0 0.0
    %253 = vmatpush1.msra.mxu0 0.0
    %254 = vmatprep.subr.mxu0 0.0
    %255 = vmatpush1.msra.mxu0 0.0
    %256 = vmatprep.subr.mxu0 0.0
    %257 = vmatpush1.msra.mxu0 0.0
    %258 = vmatprep.subr.mxu0 0.0
    %259 = vmatpush1.msra.mxu0 0.0
    %260 = vmatprep.subr.mxu0 0.0
    %261 = vmatpush1.msra.mxu0 0.0
    %262 = vmatprep.subr.mxu0 0.0
    %263 = vmatpush1.msra.mxu0 0.0
    %264 = vmatprep.subr.mxu0 0.0
    %265 = vmatpush1.msra.mxu0 0.0
    %266 = vmatprep.subr.mxu0 0.0
    %267 = vmatpush1.msra.mxu0 0.0
    %268 = vmatprep.subr.mxu0 0.0
    %269 = vmatpush1.msra.mxu0 0.0
    %v270 = vand.u32 %v62, 4294901760
    %v271 = vsub.f32 %v62, %v270
    %272 = vmatprep.subr.mxu0 %v271
    %v273 = vand.u32 %v61, 4294901760
    %v274 = vsub.f32 %v61, %v273
    %275 = vmatpush1.msra.mxu0 %v274
    %276 = vmatprep.subr.mxu0 0.0
    %277 = vmatpush2.msra.mxu0 0.0
    %278 = vmatprep.subr.mxu0 0.0
    %279 = vmatpush2.msra.mxu0 0.0
    %280 = vmatprep.subr.mxu0 0.0
    %281 = vmatpush2.msra.mxu0 0.0
    %282 = vmatprep.subr.mxu0 0.0
    %283 = vmatpush2.msra.mxu0 0.0
    %284 = vmatprep.subr.mxu0 0.0
    %285 = vmatpush2.msra.mxu0 0.0
    %286 = vmatprep.subr.mxu0 0.0
    %287 = vmatpush2.msra.mxu0 0.0
    %288 = vmatprep.subr.mxu0 0.0
    %289 = vmatpush2.msra.mxu0 0.0
    %290 = vmatprep.subr.mxu0 0.0
    %291 = vmatpush2.msra.mxu0 0.0
    %292 = vmatprep.subr.mxu0 0.0
    %293 = vmatpush2.msra.mxu0 0.0
    %294 = vmatprep.subr.mxu0 0.0
    %295 = vmatpush2.msra.mxu0 0.0
    %296 = vmatprep.subr.mxu0 0.0
    %297 = vmatpush2.msra.mxu0 0.0
    %298 = vmatprep.subr.mxu0 0.0
    %299 = vmatpush2.msra.mxu0 0.0
    %300 = vmatprep.subr.mxu0 0.0
    %301 = vmatpush2.msra.mxu0 0.0
    %302 = vmatprep.subr.mxu0 0.0
    %303 = vmatpush2.msra.mxu0 0.0
    %304 = vmatprep.subr.mxu0 0.0
    %305 = vmatpush2.msra.mxu0 0.0
    %306 = vmatprep.subr.mxu0 0.0
    %307 = vmatpush2.msra.mxu0 0.0
    %308 = vmatprep.mubr.f32.mxu0 0.0
    %v309 = vand.u32 %v78, 4294901760
    %v310 = vsub.f32 %v78, %v309
    %311 = vmatmul.mubr.f32.gmra.mxu0 %v310
    %v312 = vpop.f32.mrf.mxu0
    %v313 = vadd.f32 %v236, %v312
    %v314 = vpop.f32.mrf.mxu0
    %v315 = vadd.f32 %v238, %v314
    %316 = vdwg.mxu0
    %317 = vmatprep.subr.mxu0 0.0
    %318 = vmatpush1.msra.mxu0 0.0
    %319 = vmatprep.subr.mxu0 0.0
    %320 = vmatpush1.msra.mxu0 0.0
    %321 = vmatprep.subr.mxu0 0.0
    %322 = vmatpush1.msra.mxu0 0.0
    %323 = vmatprep.subr.mxu0 0.0
    %324 = vmatpush1.msra.mxu0 0.0
    %325 = vmatprep.subr.mxu0 0.0
    %326 = vmatpush1.msra.mxu0 0.0
    %327 = vmatprep.subr.mxu0 0.0
    %328 = vmatpush1.msra.mxu0 0.0
    %329 = vmatprep.subr.mxu0 0.0
    %330 = vmatpush1.msra.mxu0 0.0
    %331 = vmatprep.subr.mxu0 0.0
    %332 = vmatpush1.msra.mxu0 0.0
    %333 = vmatprep.subr.mxu0 0.0
    %334 = vmatpush1.msra.mxu0 0.0
    %335 = vmatprep.subr.mxu0 0.0
    %336 = vmatpush1.msra.mxu0 0.0
    %337 = vmatprep.subr.mxu0 0.0
    %338 = vmatpush1.msra.mxu0 0.0
    %339 = vmatprep.subr.mxu0 0.0
    %340 = vmatpush1.msra.mxu0 0.0
    %341 = vmatprep.subr.mxu0 0.0
    %342 = vmatpush1.msra.mxu0 0.0
    %343 = vmatprep.subr.mxu0 0.0
    %344 = vmatpush1.msra.mxu0 0.0
    %345 = vmatprep.subr.mxu0 0.0
    %346 = vmatpush1.msra.mxu0 0.0
    %v347 = vand.u32 %v62, 4294901760
    %348 = vmatprep.subr.mxu0 %v347
    %v349 = vand.u32 %v61, 4294901760
    %350 = vmatpush1.msra.mxu0 %v349
    %351 = vmatprep.subr.mxu0 0.0
    %352 = vmatpush2.msra.mxu0 0.0
    %353 = vmatprep.subr.mxu0 0.0
    %354 = vmatpush2.msra.mxu0 0.0
    %355 = vmatprep.subr.mxu0 0.0
    %356 = vmatpush2.msra.mxu0 0.0
    %357 = vmatprep.subr.mxu0 0.0
    %358 = vmatpush2.msra.mxu0 0.0
    %359 = vmatprep.subr.mxu0 0.0
    %360 = vmatpush2.msra.mxu0 0.0
    %361 = vmatprep.subr.mxu0 0.0
    %362 = vmatpush2.msra.mxu0 0.0
    %363 = vmatprep.subr.mxu0 0.0
    %364 = vmatpush2.msra.mxu0 0.0
    %365 = vmatprep.subr.mxu0 0.0
    %366 = vmatpush2.msra.mxu0 0.0
    %367 = vmatprep.subr.mxu0 0.0
    %368 = vmatpush2.msra.mxu0 0.0
    %369 = vmatprep.subr.mxu0 0.0
    %370 = vmatpush2.msra.mxu0 0.0
    %371 = vmatprep.subr.mxu0 0.0
    %372 = vmatpush2.msra.mxu0 0.0
    %373 = vmatprep.subr.mxu0 0.0
    %374 = vmatpush2.msra.mxu0 0.0
    %375 = vmatprep.subr.mxu0 0.0
    %376 = vmatpush2.msra.mxu0 0.0
    %377 = vmatprep.subr.mxu0 0.0
    %378 = vmatpush2.msra.mxu0 0.0
    %379 = vmatprep.subr.mxu0 0.0
    %380 = vmatpush2.msra.mxu0 0.0
    %381 = vmatprep.subr.mxu0 0.0
    %382 = vmatpush2.msra.mxu0 0.0
    %383 = vmatprep.mubr.f32.mxu0 0.0
    %v384 = vand.u32 %v78, 4294901760
    %v385 = vsub.f32 %v78, %v384
    %v386 = vand.u32 %v385, 4294901760
    %387 = vmatmul.mubr.f32.gmra.mxu0 %v386
    %v388 = vpop.f32.mrf.mxu0
    %v389 = vadd.f32 %v313, %v388
    %v390 = vpop.f32.mrf.mxu0
    %v391 = vadd.f32 %v315, %v390
    %392 = vdwg.mxu0
    %393 = vmatprep.subr.mxu0 0.0
    %394 = vmatpush1.msra.mxu0 0.0
    %395 = vmatprep.subr.mxu0 0.0
    %396 = vmatpush1.msra.mxu0 0.0
    %397 = vmatprep.subr.mxu0 0.0
    %398 = vmatpush1.msra.mxu0 0.0
    %399 = vmatprep.subr.mxu0 0.0
    %400 = vmatpush1.msra.mxu0 0.0
    %401 = vmatprep.subr.mxu0 0.0
    %402 = vmatpush1.msra.mxu0 0.0
    %403 = vmatprep.subr.mxu0 0.0
    %404 = vmatpush1.msra.mxu0 0.0
    %405 = vmatprep.subr.mxu0 0.0
    %406 = vmatpush1.msra.mxu0 0.0
    %407 = vmatprep.subr.mxu0 0.0
    %408 = vmatpush1.msra.mxu0 0.0
    %409 = vmatprep.subr.mxu0 0.0
    %410 = vmatpush1.msra.mxu0 0.0
    %411 = vmatprep.subr.mxu0 0.0
    %412 = vmatpush1.msra.mxu0 0.0
    %413 = vmatprep.subr.mxu0 0.0
    %414 = vmatpush1.msra.mxu0 0.0
    %415 = vmatprep.subr.mxu0 0.0
    %416 = vmatpush1.msra.mxu0 0.0
    %417 = vmatprep.subr.mxu0 0.0
    %418 = vmatpush1.msra.mxu0 0.0
    %419 = vmatprep.subr.mxu0 0.0
    %420 = vmatpush1.msra.mxu0 0.0
    %421 = vmatprep.subr.mxu0 0.0
    %422 = vmatpush1.msra.mxu0 0.0
    %v423 = vand.u32 %v62, 4294901760
    %v424 = vsub.f32 %v62, %v423
    %v425 = vand.u32 %v424, 4294901760
    %426 = vmatprep.subr.mxu0 %v425
    %v427 = vand.u32 %v61, 4294901760
    %v428 = vsub.f32 %v61, %v427
    %v429 = vand.u32 %v428, 4294901760
    %430 = vmatpush1.msra.mxu0 %v429
    %431 = vmatprep.subr.mxu0 0.0
    %432 = vmatpush2.msra.mxu0 0.0
    %433 = vmatprep.subr.mxu0 0.0
    %434 = vmatpush2.msra.mxu0 0.0
    %435 = vmatprep.subr.mxu0 0.0
    %436 = vmatpush2.msra.mxu0 0.0
    %437 = vmatprep.subr.mxu0 0.0
    %438 = vmatpush2.msra.mxu0 0.0
    %439 = vmatprep.subr.mxu0 0.0
    %440 = vmatpush2.msra.mxu0 0.0
    %441 = vmatprep.subr.mxu0 0.0
    %442 = vmatpush2.msra.mxu0 0.0
    %443 = vmatprep.subr.mxu0 0.0
    %444 = vmatpush2.msra.mxu0 0.0
    %445 = vmatprep.subr.mxu0 0.0
    %446 = vmatpush2.msra.mxu0 0.0
    %447 = vmatprep.subr.mxu0 0.0
    %448 = vmatpush2.msra.mxu0 0.0
    %449 = vmatprep.subr.mxu0 0.0
    %450 = vmatpush2.msra.mxu0 0.0
    %451 = vmatprep.subr.mxu0 0.0
    %452 = vmatpush2.msra.mxu0 0.0
    %453 = vmatprep.subr.mxu0 0.0
    %454 = vmatpush2.msra.mxu0 0.0
    %455 = vmatprep.subr.mxu0 0.0
    %456 = vmatpush2.msra.mxu0 0.0
    %457 = vmatprep.subr.mxu0 0.0
    %458 = vmatpush2.msra.mxu0 0.0
    %459 = vmatprep.subr.mxu0 0.0
    %460 = vmatpush2.msra.mxu0 0.0
    %461 = vmatprep.subr.mxu0 0.0
    %462 = vmatpush2.msra.mxu0 0.0
    %463 = vmatprep.mubr.f32.mxu0 0.0
    %v464 = vand.u32 %v78, 4294901760
    %465 = vmatmul.mubr.f32.gmra.mxu0 %v464
    %v466 = vpop.f32.mrf.mxu0
    %v467 = vadd.f32 %v389, %v466
    %v468 = vpop.f32.mrf.mxu0
    %v469 = vadd.f32 %v391, %v468
    %470 = vdwg.mxu0
    %471 = vmatprep.subr.mxu0 0.0
    %472 = vmatpush1.msra.mxu0 0.0
    %473 = vmatprep.subr.mxu0 0.0
    %474 = vmatpush1.msra.mxu0 0.0
    %475 = vmatprep.subr.mxu0 0.0
    %476 = vmatpush1.msra.mxu0 0.0
    %477 = vmatprep.subr.mxu0 0.0
    %478 = vmatpush1.msra.mxu0 0.0
    %479 = vmatprep.subr.mxu0 0.0
    %480 = vmatpush1.msra.mxu0 0.0
    %481 = vmatprep.subr.mxu0 0.0
    %482 = vmatpush1.msra.mxu0 0.0
    %483 = vmatprep.subr.mxu0 0.0
    %484 = vmatpush1.msra.mxu0 0.0
    %485 = vmatprep.subr.mxu0 0.0
    %486 = vmatpush1.msra.mxu0 0.0
    %487 = vmatprep.subr.mxu0 0.0
    %488 = vmatpush1.msra.mxu0 0.0
    %489 = vmatprep.subr.mxu0 0.0
    %490 = vmatpush1.msra.mxu0 0.0
    %491 = vmatprep.subr.mxu0 0.0
    %492 = vmatpush1.msra.mxu0 0.0
    %493 = vmatprep.subr.mxu0 0.0
    %494 = vmatpush1.msra.mxu0 0.0
    %495 = vmatprep.subr.mxu0 0.0
    %496 = vmatpush1.msra.mxu0 0.0
    %497 = vmatprep.subr.mxu0 0.0
    %498 = vmatpush1.msra.mxu0 0.0
    %499 = vmatprep.subr.mxu0 0.0
    %500 = vmatpush1.msra.mxu0 0.0
    %v501 = vand.u32 %v62, 4294901760
    %502 = vmatprep.subr.mxu0 %v501
    %v503 = vand.u32 %v61, 4294901760
    %504 = vmatpush1.msra.mxu0 %v503
    %505 = vmatprep.subr.mxu0 0.0
    %506 = vmatpush2.msra.mxu0 0.0
    %507 = vmatprep.subr.mxu0 0.0
    %508 = vmatpush2.msra.mxu0 0.0
    %509 = vmatprep.subr.mxu0 0.0
    %510 = vmatpush2.msra.mxu0 0.0
    %511 = vmatprep.subr.mxu0 0.0
    %512 = vmatpush2.msra.mxu0 0.0
    %513 = vmatprep.subr.mxu0 0.0
    %514 = vmatpush2.msra.mxu0 0.0
    %515 = vmatprep.subr.mxu0 0.0
    %516 = vmatpush2.msra.mxu0 0.0
    %517 = vmatprep.subr.mxu0 0.0
    %518 = vmatpush2.msra.mxu0 0.0
    %519 = vmatprep.subr.mxu0 0.0
    %520 = vmatpush2.msra.mxu0 0.0
    %521 = vmatprep.subr.mxu0 0.0
    %522 = vmatpush2.msra.mxu0 0.0
    %523 = vmatprep.subr.mxu0 0.0
    %524 = vmatpush2.msra.mxu0 0.0
    %525 = vmatprep.subr.mxu0 0.0
    %526 = vmatpush2.msra.mxu0 0.0
    %527 = vmatprep.subr.mxu0 0.0
    %528 = vmatpush2.msra.mxu0 0.0
    %529 = vmatprep.subr.mxu0 0.0
    %530 = vmatpush2.msra.mxu0 0.0
    %531 = vmatprep.subr.mxu0 0.0
    %532 = vmatpush2.msra.mxu0 0.0
    %533 = vmatprep.subr.mxu0 0.0
    %534 = vmatpush2.msra.mxu0 0.0
    %535 = vmatprep.subr.mxu0 0.0
    %536 = vmatpush2.msra.mxu0 0.0
    %537 = vmatprep.mubr.f32.mxu0 0.0
    %v538 = vand.u32 %v78, 4294901760
    %539 = vmatmul.mubr.f32.gmra.mxu0 %v538
    %v540 = vpop.f32.mrf.mxu0
    %v541 = vadd.f32 %v467, %v540
    %v542 = vpop.f32.mrf.mxu0
    %v543 = vadd.f32 %v469, %v542
    %544 = vdwg.mxu0
    %v545 = vmax.f32 %v541, 0.0
    %v546 = vmax.f32 %v543, 0.0
    %547 = vrot.lane.b32.xlu0 %v545, 17
    %v548 = vpop.permute.xlu0 %547
    %549 = vrot.lane.b32.xlu0 %v546, 17
    %v550 = vpop.permute.xlu0 %549
    %v551 = vlaneseq
    %v552 = vand.u32 %v551, 127
    %vm553 = vcmp.lt.s32.totalorder %v552, 17
    %v554 = vsel %vm553, %v548, %v550
    %v555 = vsel %vm553, %v550, %v548
    %v556 = vlaneseq
    %v557 = vshrl.u32 %v556, 7
    %v558 = vsub.s32 0, %v557
    %v559 = vrot.slane %v67, %v558
    %v560 = vlaneseq
    %v561 = vshrl.u32 %v560, 7
    %v562 = vsub.s32 0, %v561
    %v563 = vrot.slane %v68, %v562
    %v564 = vmul.f32 %v555, %v559
    %v565 = vmul.f32 %v554, %v563
    %566 = vrot.lane.b32.xlu0 %v545, 16
    %v567 = vpop.permute.xlu0 %566
    %568 = vrot.lane.b32.xlu0 %v546, 16
    %v569 = vpop.permute.xlu0 %568
    %vm570 = vcmp.lt.s32.totalorder %v552, 16
    %v571 = vsel %vm570, %v567, %v569
    %v572 = vsel %vm570, %v569, %v567
    %v573 = vlaneseq
    %v574 = vshrl.u32 %v573, 7
    %v575 = vsub.s32 1, %v574
    %v576 = vrot.slane %v67, %v575
    %v577 = vlaneseq
    %v578 = vshrl.u32 %v577, 7
    %v579 = vsub.s32 1, %v578
    %v580 = vrot.slane %v68, %v579
    %v581 = vmul.f32 %v572, %v576
    %v582 = vmul.f32 %v571, %v580
    %583 = vrot.lane.b32.xlu0 %v545, 15
    %v584 = vpop.permute.xlu0 %583
    %585 = vrot.lane.b32.xlu0 %v546, 15
    %v586 = vpop.permute.xlu0 %585
    %vm587 = vcmp.lt.s32.totalorder %v552, 15
    %v588 = vsel %vm587, %v584, %v586
    %v589 = vsel %vm587, %v586, %v584
    %v590 = vlaneseq
    %v591 = vshrl.u32 %v590, 7
    %v592 = vsub.s32 2, %v591
    %v593 = vrot.slane %v67, %v592
    %v594 = vlaneseq
    %v595 = vshrl.u32 %v594, 7
    %v596 = vsub.s32 2, %v595
    %v597 = vrot.slane %v68, %v596
    %v598 = vmul.f32 %v589, %v593
    %v599 = vmul.f32 %v588, %v597
    %600 = vrot.lane.b32.xlu0 %v545, 1
    %v601 = vpop.permute.xlu0 %600
    %602 = vrot.lane.b32.xlu0 %v546, 1
    %v603 = vpop.permute.xlu0 %602
    %vm604 = vcmp.lt.s32.totalorder %v552, 1
    %v605 = vsel %vm604, %v601, %v603
    %v606 = vsel %vm604, %v603, %v601
    %v607 = vlaneseq
    %v608 = vshrl.u32 %v607, 7
    %v609 = vsub.s32 3, %v608
    %v610 = vrot.slane %v67, %v609
    %v611 = vlaneseq
    %v612 = vshrl.u32 %v611, 7
    %v613 = vsub.s32 3, %v612
    %v614 = vrot.slane %v68, %v613
    %v615 = vmul.f32 %v606, %v610
    %v616 = vmul.f32 %v605, %v614
    %v617 = vlaneseq
    %v618 = vshrl.u32 %v617, 7
    %v619 = vsub.s32 4, %v618
    %v620 = vrot.slane %v67, %v619
    %v621 = vlaneseq
    %v622 = vshrl.u32 %v621, 7
    %v623 = vsub.s32 4, %v622
    %v624 = vrot.slane %v68, %v623
    %v625 = vmul.f32 %v545, %v620
    %v626 = vmul.f32 %v546, %v624
    %627 = vrot.lane.b32.xlu0 %v545, 127
    %v628 = vpop.permute.xlu0 %627
    %629 = vrot.lane.b32.xlu0 %v546, 127
    %v630 = vpop.permute.xlu0 %629
    %vm631 = vcmp.lt.s32.totalorder %v552, 127
    %v632 = vsel %vm631, %v628, %v630
    %v633 = vsel %vm631, %v630, %v628
    %v634 = vlaneseq
    %v635 = vshrl.u32 %v634, 7
    %v636 = vsub.s32 5, %v635
    %v637 = vrot.slane %v67, %v636
    %v638 = vlaneseq
    %v639 = vshrl.u32 %v638, 7
    %v640 = vsub.s32 5, %v639
    %v641 = vrot.slane %v68, %v640
    %v642 = vmul.f32 %v632, %v637
    %v643 = vmul.f32 %v633, %v641
    %644 = vrot.lane.b32.xlu0 %v545, 113
    %v645 = vpop.permute.xlu0 %644
    %646 = vrot.lane.b32.xlu0 %v546, 113
    %v647 = vpop.permute.xlu0 %646
    %vm648 = vcmp.lt.s32.totalorder %v552, 113
    %v649 = vsel %vm648, %v645, %v647
    %v650 = vsel %vm648, %v647, %v645
    %v651 = vlaneseq
    %v652 = vshrl.u32 %v651, 7
    %v653 = vsub.s32 6, %v652
    %v654 = vrot.slane %v67, %v653
    %v655 = vlaneseq
    %v656 = vshrl.u32 %v655, 7
    %v657 = vsub.s32 6, %v656
    %v658 = vrot.slane %v68, %v657
    %v659 = vmul.f32 %v649, %v654
    %v660 = vmul.f32 %v650, %v658
    %661 = vrot.lane.b32.xlu0 %v545, 112
    %v662 = vpop.permute.xlu0 %661
    %663 = vrot.lane.b32.xlu0 %v546, 112
    %v664 = vpop.permute.xlu0 %663
    %vm665 = vcmp.lt.s32.totalorder %v552, 112
    %v666 = vsel %vm665, %v662, %v664
    %v667 = vsel %vm665, %v664, %v662
    %v668 = vlaneseq
    %v669 = vshrl.u32 %v668, 7
    %v670 = vsub.s32 7, %v669
    %v671 = vrot.slane %v67, %v670
    %v672 = vlaneseq
    %v673 = vshrl.u32 %v672, 7
    %v674 = vsub.s32 7, %v673
    %v675 = vrot.slane %v68, %v674
    %v676 = vmul.f32 %v666, %v671
    %v677 = vmul.f32 %v667, %v675
    %678 = vrot.lane.b32.xlu0 %v545, 111
    %v679 = vpop.permute.xlu0 %678
    %680 = vrot.lane.b32.xlu0 %v546, 111
    %v681 = vpop.permute.xlu0 %680
    %vm682 = vcmp.lt.s32.totalorder %v552, 111
    %v683 = vsel %vm682, %v679, %v681
    %v684 = vsel %vm682, %v681, %v679
    %v685 = vlaneseq
    %v686 = vshrl.u32 %v685, 7
    %v687 = vsub.s32 0, %v686
    %v688 = vrot.slane %v69, %v687
    %v689 = vlaneseq
    %v690 = vshrl.u32 %v689, 7
    %v691 = vsub.s32 0, %v690
    %v692 = vrot.slane %v70, %v691
    %v693 = vmul.f32 %v683, %v688
    %v694 = vmul.f32 %v684, %v692
    %696 = vset.pattern.permute.xlu0 0
    %697 = vperm.xlu0 %696, %v66
    %v698 = vpop.permute.xlu0 %697
    %vm700 = vcmask 588800
    %v702 = vsel %vm700, %v65, 0
    %704 = vmatprep.subr.mxu0 0.0
    %705 = vmatpush1.msra.mxu0 0.0
    %706 = vmatprep.subr.mxu0 0.0
    %707 = vmatpush1.msra.mxu0 0.0
    %708 = vmatprep.subr.mxu0 0.0
    %709 = vmatpush1.msra.mxu0 0.0
    %710 = vmatprep.subr.mxu0 0.0
    %711 = vmatpush1.msra.mxu0 0.0
    %712 = vmatprep.subr.mxu0 0.0
    %713 = vmatpush1.msra.mxu0 0.0
    %714 = vmatprep.subr.mxu0 0.0
    %715 = vmatpush1.msra.mxu0 0.0
    %716 = vmatprep.subr.mxu0 0.0
    %717 = vmatpush1.msra.mxu0 0.0
    %v718 = vand.u32 %v694, 4294901760
    %719 = vmatprep.subr.mxu0 %v718
    %v720 = vand.u32 %v693, 4294901760
    %721 = vmatpush1.msra.mxu0 %v720
    %v722 = vand.u32 %v677, 4294901760
    %723 = vmatprep.subr.mxu0 %v722
    %v724 = vand.u32 %v676, 4294901760
    %725 = vmatpush1.msra.mxu0 %v724
    %v726 = vand.u32 %v660, 4294901760
    %727 = vmatprep.subr.mxu0 %v726
    %v728 = vand.u32 %v659, 4294901760
    %729 = vmatpush1.msra.mxu0 %v728
    %v730 = vand.u32 %v643, 4294901760
    %731 = vmatprep.subr.mxu0 %v730
    %v732 = vand.u32 %v642, 4294901760
    %733 = vmatpush1.msra.mxu0 %v732
    %v734 = vand.u32 %v626, 4294901760
    %735 = vmatprep.subr.mxu0 %v734
    %v736 = vand.u32 %v625, 4294901760
    %737 = vmatpush1.msra.mxu0 %v736
    %v738 = vand.u32 %v616, 4294901760
    %739 = vmatprep.subr.mxu0 %v738
    %v740 = vand.u32 %v615, 4294901760
    %741 = vmatpush1.msra.mxu0 %v740
    %v742 = vand.u32 %v599, 4294901760
    %743 = vmatprep.subr.mxu0 %v742
    %v744 = vand.u32 %v598, 4294901760
    %745 = vmatpush1.msra.mxu0 %v744
    %v746 = vand.u32 %v582, 4294901760
    %747 = vmatprep.subr.mxu0 %v746
    %v748 = vand.u32 %v581, 4294901760
    %749 = vmatpush1.msra.mxu0 %v748
    %v750 = vand.u32 %v565, 4294901760
    %751 = vmatprep.subr.mxu0 %v750
    %v752 = vand.u32 %v564, 4294901760
    %753 = vmatpush1.msra.mxu0 %v752
    %754 = vmatprep.subr.mxu0 0.0
    %755 = vmatpush2.msra.mxu0 0.0
    %756 = vmatprep.subr.mxu0 0.0
    %757 = vmatpush2.msra.mxu0 0.0
    %758 = vmatprep.subr.mxu0 0.0
    %759 = vmatpush2.msra.mxu0 0.0
    %760 = vmatprep.subr.mxu0 0.0
    %761 = vmatpush2.msra.mxu0 0.0
    %762 = vmatprep.subr.mxu0 0.0
    %763 = vmatpush2.msra.mxu0 0.0
    %764 = vmatprep.subr.mxu0 0.0
    %765 = vmatpush2.msra.mxu0 0.0
    %766 = vmatprep.subr.mxu0 0.0
    %767 = vmatpush2.msra.mxu0 0.0
    %768 = vmatprep.subr.mxu0 0.0
    %769 = vmatpush2.msra.mxu0 0.0
    %770 = vmatprep.subr.mxu0 0.0
    %771 = vmatpush2.msra.mxu0 0.0
    %772 = vmatprep.subr.mxu0 0.0
    %773 = vmatpush2.msra.mxu0 0.0
    %774 = vmatprep.subr.mxu0 0.0
    %775 = vmatpush2.msra.mxu0 0.0
    %776 = vmatprep.subr.mxu0 0.0
    %777 = vmatpush2.msra.mxu0 0.0
    %778 = vmatprep.subr.mxu0 0.0
    %779 = vmatpush2.msra.mxu0 0.0
    %780 = vmatprep.subr.mxu0 0.0
    %781 = vmatpush2.msra.mxu0 0.0
    %782 = vmatprep.subr.mxu0 0.0
    %783 = vmatpush2.msra.mxu0 0.0
    %784 = vmatprep.subr.mxu0 0.0
    %785 = vmatpush2.msra.mxu0 0.0
    %786 = vmatprep.mubr.f32.mxu0 0.0
    %v787 = vand.u32 %v702, 4294901760
    %v788 = vsub.f32 %v702, %v787
    %v789 = vand.u32 %v788, 4294901760
    %v790 = vsub.f32 %v788, %v789
    %v791 = vand.u32 %v790, 4294901760
    %792 = vmatmul.mubr.f32.gmra.mxu0 %v791
    %v793 = vpop.f32.mrf.mxu0
    %v794 = vadd.f32 %v698, %v793
    %v795 = vpop.f32.mrf.mxu0
    %v796 = vadd.f32 %v698, %v795
    %797 = vdwg.mxu0
    %798 = vmatprep.subr.mxu0 0.0
    %799 = vmatpush1.msra.mxu0 0.0
    %800 = vmatprep.subr.mxu0 0.0
    %801 = vmatpush1.msra.mxu0 0.0
    %802 = vmatprep.subr.mxu0 0.0
    %803 = vmatpush1.msra.mxu0 0.0
    %804 = vmatprep.subr.mxu0 0.0
    %805 = vmatpush1.msra.mxu0 0.0
    %806 = vmatprep.subr.mxu0 0.0
    %807 = vmatpush1.msra.mxu0 0.0
    %808 = vmatprep.subr.mxu0 0.0
    %809 = vmatpush1.msra.mxu0 0.0
    %810 = vmatprep.subr.mxu0 0.0
    %811 = vmatpush1.msra.mxu0 0.0
    %v812 = vand.u32 %v694, 4294901760
    %v813 = vsub.f32 %v694, %v812
    %v814 = vand.u32 %v813, 4294901760
    %v815 = vsub.f32 %v813, %v814
    %v816 = vand.u32 %v815, 4294901760
    %817 = vmatprep.subr.mxu0 %v816
    %v818 = vand.u32 %v693, 4294901760
    %v819 = vsub.f32 %v693, %v818
    %v820 = vand.u32 %v819, 4294901760
    %v821 = vsub.f32 %v819, %v820
    %v822 = vand.u32 %v821, 4294901760
    %823 = vmatpush1.msra.mxu0 %v822
    %v824 = vand.u32 %v677, 4294901760
    %v825 = vsub.f32 %v677, %v824
    %v826 = vand.u32 %v825, 4294901760
    %v827 = vsub.f32 %v825, %v826
    %v828 = vand.u32 %v827, 4294901760
    %829 = vmatprep.subr.mxu0 %v828
    %v830 = vand.u32 %v676, 4294901760
    %v831 = vsub.f32 %v676, %v830
    %v832 = vand.u32 %v831, 4294901760
    %v833 = vsub.f32 %v831, %v832
    %v834 = vand.u32 %v833, 4294901760
    %835 = vmatpush1.msra.mxu0 %v834
    %v836 = vand.u32 %v660, 4294901760
    %v837 = vsub.f32 %v660, %v836
    %v838 = vand.u32 %v837, 4294901760
    %v839 = vsub.f32 %v837, %v838
    %v840 = vand.u32 %v839, 4294901760
    %841 = vmatprep.subr.mxu0 %v840
    %v842 = vand.u32 %v659, 4294901760
    %v843 = vsub.f32 %v659, %v842
    %v844 = vand.u32 %v843, 4294901760
    %v845 = vsub.f32 %v843, %v844
    %v846 = vand.u32 %v845, 4294901760
    %847 = vmatpush1.msra.mxu0 %v846
    %v848 = vand.u32 %v643, 4294901760
    %v849 = vsub.f32 %v643, %v848
    %v850 = vand.u32 %v849, 4294901760
    %v851 = vsub.f32 %v849, %v850
    %v852 = vand.u32 %v851, 4294901760
    %853 = vmatprep.subr.mxu0 %v852
    %v854 = vand.u32 %v642, 4294901760
    %v855 = vsub.f32 %v642, %v854
    %v856 = vand.u32 %v855, 4294901760
    %v857 = vsub.f32 %v855, %v856
    %v858 = vand.u32 %v857, 4294901760
    %859 = vmatpush1.msra.mxu0 %v858
    %v860 = vand.u32 %v626, 4294901760
    %v861 = vsub.f32 %v626, %v860
    %v862 = vand.u32 %v861, 4294901760
    %v863 = vsub.f32 %v861, %v862
    %v864 = vand.u32 %v863, 4294901760
    %865 = vmatprep.subr.mxu0 %v864
    %v866 = vand.u32 %v625, 4294901760
    %v867 = vsub.f32 %v625, %v866
    %v868 = vand.u32 %v867, 4294901760
    %v869 = vsub.f32 %v867, %v868
    %v870 = vand.u32 %v869, 4294901760
    %871 = vmatpush1.msra.mxu0 %v870
    %v872 = vand.u32 %v616, 4294901760
    %v873 = vsub.f32 %v616, %v872
    %v874 = vand.u32 %v873, 4294901760
    %v875 = vsub.f32 %v873, %v874
    %v876 = vand.u32 %v875, 4294901760
    %877 = vmatprep.subr.mxu0 %v876
    %v878 = vand.u32 %v615, 4294901760
    %v879 = vsub.f32 %v615, %v878
    %v880 = vand.u32 %v879, 4294901760
    %v881 = vsub.f32 %v879, %v880
    %v882 = vand.u32 %v881, 4294901760
    %883 = vmatpush1.msra.mxu0 %v882
    %v884 = vand.u32 %v599, 4294901760
    %v885 = vsub.f32 %v599, %v884
    %v886 = vand.u32 %v885, 4294901760
    %v887 = vsub.f32 %v885, %v886
    %v888 = vand.u32 %v887, 4294901760
    %889 = vmatprep.subr.mxu0 %v888
    %v890 = vand.u32 %v598, 4294901760
    %v891 = vsub.f32 %v598, %v890
    %v892 = vand.u32 %v891, 4294901760
    %v893 = vsub.f32 %v891, %v892
    %v894 = vand.u32 %v893, 4294901760
    %895 = vmatpush1.msra.mxu0 %v894
    %v896 = vand.u32 %v582, 4294901760
    %v897 = vsub.f32 %v582, %v896
    %v898 = vand.u32 %v897, 4294901760
    %v899 = vsub.f32 %v897, %v898
    %v900 = vand.u32 %v899, 4294901760
    %901 = vmatprep.subr.mxu0 %v900
    %v902 = vand.u32 %v581, 4294901760
    %v903 = vsub.f32 %v581, %v902
    %v904 = vand.u32 %v903, 4294901760
    %v905 = vsub.f32 %v903, %v904
    %v906 = vand.u32 %v905, 4294901760
    %907 = vmatpush1.msra.mxu0 %v906
    %v908 = vand.u32 %v565, 4294901760
    %v909 = vsub.f32 %v565, %v908
    %v910 = vand.u32 %v909, 4294901760
    %v911 = vsub.f32 %v909, %v910
    %v912 = vand.u32 %v911, 4294901760
    %913 = vmatprep.subr.mxu0 %v912
    %v914 = vand.u32 %v564, 4294901760
    %v915 = vsub.f32 %v564, %v914
    %v916 = vand.u32 %v915, 4294901760
    %v917 = vsub.f32 %v915, %v916
    %v918 = vand.u32 %v917, 4294901760
    %919 = vmatpush1.msra.mxu0 %v918
    %920 = vmatprep.subr.mxu0 0.0
    %921 = vmatpush2.msra.mxu0 0.0
    %922 = vmatprep.subr.mxu0 0.0
    %923 = vmatpush2.msra.mxu0 0.0
    %924 = vmatprep.subr.mxu0 0.0
    %925 = vmatpush2.msra.mxu0 0.0
    %926 = vmatprep.subr.mxu0 0.0
    %927 = vmatpush2.msra.mxu0 0.0
    %928 = vmatprep.subr.mxu0 0.0
    %929 = vmatpush2.msra.mxu0 0.0
    %930 = vmatprep.subr.mxu0 0.0
    %931 = vmatpush2.msra.mxu0 0.0
    %932 = vmatprep.subr.mxu0 0.0
    %933 = vmatpush2.msra.mxu0 0.0
    %934 = vmatprep.subr.mxu0 0.0
    %935 = vmatpush2.msra.mxu0 0.0
    %936 = vmatprep.subr.mxu0 0.0
    %937 = vmatpush2.msra.mxu0 0.0
    %938 = vmatprep.subr.mxu0 0.0
    %939 = vmatpush2.msra.mxu0 0.0
    %940 = vmatprep.subr.mxu0 0.0
    %941 = vmatpush2.msra.mxu0 0.0
    %942 = vmatprep.subr.mxu0 0.0
    %943 = vmatpush2.msra.mxu0 0.0
    %944 = vmatprep.subr.mxu0 0.0
    %945 = vmatpush2.msra.mxu0 0.0
    %946 = vmatprep.subr.mxu0 0.0
    %947 = vmatpush2.msra.mxu0 0.0
    %948 = vmatprep.subr.mxu0 0.0
    %949 = vmatpush2.msra.mxu0 0.0
    %950 = vmatprep.subr.mxu0 0.0
    %951 = vmatpush2.msra.mxu0 0.0
    %952 = vmatprep.mubr.f32.mxu0 0.0
    %v953 = vand.u32 %v702, 4294901760
    %954 = vmatmul.mubr.f32.gmra.mxu0 %v953
    %v955 = vpop.f32.mrf.mxu0
    %v956 = vadd.f32 %v794, %v955
    %v957 = vpop.f32.mrf.mxu0
    %v958 = vadd.f32 %v796, %v957
    %959 = vdwg.mxu0
    %960 = vmatprep.subr.mxu0 0.0
    %961 = vmatpush1.msra.mxu0 0.0
    %962 = vmatprep.subr.mxu0 0.0
    %963 = vmatpush1.msra.mxu0 0.0
    %964 = vmatprep.subr.mxu0 0.0
    %965 = vmatpush1.msra.mxu0 0.0
    %966 = vmatprep.subr.mxu0 0.0
    %967 = vmatpush1.msra.mxu0 0.0
    %968 = vmatprep.subr.mxu0 0.0
    %969 = vmatpush1.msra.mxu0 0.0
    %970 = vmatprep.subr.mxu0 0.0
    %971 = vmatpush1.msra.mxu0 0.0
    %972 = vmatprep.subr.mxu0 0.0
    %973 = vmatpush1.msra.mxu0 0.0
    %v974 = vand.u32 %v694, 4294901760
    %v975 = vsub.f32 %v694, %v974
    %976 = vmatprep.subr.mxu0 %v975
    %v977 = vand.u32 %v693, 4294901760
    %v978 = vsub.f32 %v693, %v977
    %979 = vmatpush1.msra.mxu0 %v978
    %v980 = vand.u32 %v677, 4294901760
    %v981 = vsub.f32 %v677, %v980
    %982 = vmatprep.subr.mxu0 %v981
    %v983 = vand.u32 %v676, 4294901760
    %v984 = vsub.f32 %v676, %v983
    %985 = vmatpush1.msra.mxu0 %v984
    %v986 = vand.u32 %v660, 4294901760
    %v987 = vsub.f32 %v660, %v986
    %988 = vmatprep.subr.mxu0 %v987
    %v989 = vand.u32 %v659, 4294901760
    %v990 = vsub.f32 %v659, %v989
    %991 = vmatpush1.msra.mxu0 %v990
    %v992 = vand.u32 %v643, 4294901760
    %v993 = vsub.f32 %v643, %v992
    %994 = vmatprep.subr.mxu0 %v993
    %v995 = vand.u32 %v642, 4294901760
    %v996 = vsub.f32 %v642, %v995
    %997 = vmatpush1.msra.mxu0 %v996
    %v998 = vand.u32 %v626, 4294901760
    %v999 = vsub.f32 %v626, %v998
    %1000 = vmatprep.subr.mxu0 %v999
    %v1001 = vand.u32 %v625, 4294901760
    %v1002 = vsub.f32 %v625, %v1001
    %1003 = vmatpush1.msra.mxu0 %v1002
    %v1004 = vand.u32 %v616, 4294901760
    %v1005 = vsub.f32 %v616, %v1004
    %1006 = vmatprep.subr.mxu0 %v1005
    %v1007 = vand.u32 %v615, 4294901760
    %v1008 = vsub.f32 %v615, %v1007
    %1009 = vmatpush1.msra.mxu0 %v1008
    %v1010 = vand.u32 %v599, 4294901760
    %v1011 = vsub.f32 %v599, %v1010
    %1012 = vmatprep.subr.mxu0 %v1011
    %v1013 = vand.u32 %v598, 4294901760
    %v1014 = vsub.f32 %v598, %v1013
    %1015 = vmatpush1.msra.mxu0 %v1014
    %v1016 = vand.u32 %v582, 4294901760
    %v1017 = vsub.f32 %v582, %v1016
    %1018 = vmatprep.subr.mxu0 %v1017
    %v1019 = vand.u32 %v581, 4294901760
    %v1020 = vsub.f32 %v581, %v1019
    %1021 = vmatpush1.msra.mxu0 %v1020
    %v1022 = vand.u32 %v565, 4294901760
    %v1023 = vsub.f32 %v565, %v1022
    %1024 = vmatprep.subr.mxu0 %v1023
    %v1025 = vand.u32 %v564, 4294901760
    %v1026 = vsub.f32 %v564, %v1025
    %1027 = vmatpush1.msra.mxu0 %v1026
    %1028 = vmatprep.subr.mxu0 0.0
    %1029 = vmatpush2.msra.mxu0 0.0
    %1030 = vmatprep.subr.mxu0 0.0
    %1031 = vmatpush2.msra.mxu0 0.0
    %1032 = vmatprep.subr.mxu0 0.0
    %1033 = vmatpush2.msra.mxu0 0.0
    %1034 = vmatprep.subr.mxu0 0.0
    %1035 = vmatpush2.msra.mxu0 0.0
    %1036 = vmatprep.subr.mxu0 0.0
    %1037 = vmatpush2.msra.mxu0 0.0
    %1038 = vmatprep.subr.mxu0 0.0
    %1039 = vmatpush2.msra.mxu0 0.0
    %1040 = vmatprep.subr.mxu0 0.0
    %1041 = vmatpush2.msra.mxu0 0.0
    %1042 = vmatprep.subr.mxu0 0.0
    %1043 = vmatpush2.msra.mxu0 0.0
    %1044 = vmatprep.subr.mxu0 0.0
    %1045 = vmatpush2.msra.mxu0 0.0
    %1046 = vmatprep.subr.mxu0 0.0
    %1047 = vmatpush2.msra.mxu0 0.0
    %1048 = vmatprep.subr.mxu0 0.0
    %1049 = vmatpush2.msra.mxu0 0.0
    %1050 = vmatprep.subr.mxu0 0.0
    %1051 = vmatpush2.msra.mxu0 0.0
    %1052 = vmatprep.subr.mxu0 0.0
    %1053 = vmatpush2.msra.mxu0 0.0
    %1054 = vmatprep.subr.mxu0 0.0
    %1055 = vmatpush2.msra.mxu0 0.0
    %1056 = vmatprep.subr.mxu0 0.0
    %1057 = vmatpush2.msra.mxu0 0.0
    %1058 = vmatprep.subr.mxu0 0.0
    %1059 = vmatpush2.msra.mxu0 0.0
    %1060 = vmatprep.mubr.f32.mxu0 0.0
    %v1061 = vand.u32 %v702, 4294901760
    %v1062 = vsub.f32 %v702, %v1061
    %1063 = vmatmul.mubr.f32.gmra.mxu0 %v1062
    %v1064 = vpop.f32.mrf.mxu0
    %v1065 = vadd.f32 %v956, %v1064
    %v1066 = vpop.f32.mrf.mxu0
    %v1067 = vadd.f32 %v958, %v1066
    %1068 = vdwg.mxu0
    %1069 = vmatprep.subr.mxu0 0.0
    %1070 = vmatpush1.msra.mxu0 0.0
    %1071 = vmatprep.subr.mxu0 0.0
    %1072 = vmatpush1.msra.mxu0 0.0
    %1073 = vmatprep.subr.mxu0 0.0
    %1074 = vmatpush1.msra.mxu0 0.0
    %1075 = vmatprep.subr.mxu0 0.0
    %1076 = vmatpush1.msra.mxu0 0.0
    %1077 = vmatprep.subr.mxu0 0.0
    %1078 = vmatpush1.msra.mxu0 0.0
    %1079 = vmatprep.subr.mxu0 0.0
    %1080 = vmatpush1.msra.mxu0 0.0
    %1081 = vmatprep.subr.mxu0 0.0
    %1082 = vmatpush1.msra.mxu0 0.0
    %v1083 = vand.u32 %v694, 4294901760
    %1084 = vmatprep.subr.mxu0 %v1083
    %v1085 = vand.u32 %v693, 4294901760
    %1086 = vmatpush1.msra.mxu0 %v1085
    %v1087 = vand.u32 %v677, 4294901760
    %1088 = vmatprep.subr.mxu0 %v1087
    %v1089 = vand.u32 %v676, 4294901760
    %1090 = vmatpush1.msra.mxu0 %v1089
    %v1091 = vand.u32 %v660, 4294901760
    %1092 = vmatprep.subr.mxu0 %v1091
    %v1093 = vand.u32 %v659, 4294901760
    %1094 = vmatpush1.msra.mxu0 %v1093
    %v1095 = vand.u32 %v643, 4294901760
    %1096 = vmatprep.subr.mxu0 %v1095
    %v1097 = vand.u32 %v642, 4294901760
    %1098 = vmatpush1.msra.mxu0 %v1097
    %v1099 = vand.u32 %v626, 4294901760
    %1100 = vmatprep.subr.mxu0 %v1099
    %v1101 = vand.u32 %v625, 4294901760
    %1102 = vmatpush1.msra.mxu0 %v1101
    %v1103 = vand.u32 %v616, 4294901760
    %1104 = vmatprep.subr.mxu0 %v1103
    %v1105 = vand.u32 %v615, 4294901760
    %1106 = vmatpush1.msra.mxu0 %v1105
    %v1107 = vand.u32 %v599, 4294901760
    %1108 = vmatprep.subr.mxu0 %v1107
    %v1109 = vand.u32 %v598, 4294901760
    %1110 = vmatpush1.msra.mxu0 %v1109
    %v1111 = vand.u32 %v582, 4294901760
    %1112 = vmatprep.subr.mxu0 %v1111
    %v1113 = vand.u32 %v581, 4294901760
    %1114 = vmatpush1.msra.mxu0 %v1113
    %v1115 = vand.u32 %v565, 4294901760
    %1116 = vmatprep.subr.mxu0 %v1115
    %v1117 = vand.u32 %v564, 4294901760
    %1118 = vmatpush1.msra.mxu0 %v1117
    %1119 = vmatprep.subr.mxu0 0.0
    %1120 = vmatpush2.msra.mxu0 0.0
    %1121 = vmatprep.subr.mxu0 0.0
    %1122 = vmatpush2.msra.mxu0 0.0
    %1123 = vmatprep.subr.mxu0 0.0
    %1124 = vmatpush2.msra.mxu0 0.0
    %1125 = vmatprep.subr.mxu0 0.0
    %1126 = vmatpush2.msra.mxu0 0.0
    %1127 = vmatprep.subr.mxu0 0.0
    %1128 = vmatpush2.msra.mxu0 0.0
    %1129 = vmatprep.subr.mxu0 0.0
    %1130 = vmatpush2.msra.mxu0 0.0
    %1131 = vmatprep.subr.mxu0 0.0
    %1132 = vmatpush2.msra.mxu0 0.0
    %1133 = vmatprep.subr.mxu0 0.0
    %1134 = vmatpush2.msra.mxu0 0.0
    %1135 = vmatprep.subr.mxu0 0.0
    %1136 = vmatpush2.msra.mxu0 0.0
    %1137 = vmatprep.subr.mxu0 0.0
    %1138 = vmatpush2.msra.mxu0 0.0
    %1139 = vmatprep.subr.mxu0 0.0
    %1140 = vmatpush2.msra.mxu0 0.0
    %1141 = vmatprep.subr.mxu0 0.0
    %1142 = vmatpush2.msra.mxu0 0.0
    %1143 = vmatprep.subr.mxu0 0.0
    %1144 = vmatpush2.msra.mxu0 0.0
    %1145 = vmatprep.subr.mxu0 0.0
    %1146 = vmatpush2.msra.mxu0 0.0
    %1147 = vmatprep.subr.mxu0 0.0
    %1148 = vmatpush2.msra.mxu0 0.0
    %1149 = vmatprep.subr.mxu0 0.0
    %1150 = vmatpush2.msra.mxu0 0.0
    %1151 = vmatprep.mubr.f32.mxu0 0.0
    %v1152 = vand.u32 %v702, 4294901760
    %v1153 = vsub.f32 %v702, %v1152
    %v1154 = vand.u32 %v1153, 4294901760
    %1155 = vmatmul.mubr.f32.gmra.mxu0 %v1154
    %v1156 = vpop.f32.mrf.mxu0
    %v1157 = vadd.f32 %v1065, %v1156
    %v1158 = vpop.f32.mrf.mxu0
    %v1159 = vadd.f32 %v1067, %v1158
    %1160 = vdwg.mxu0
    %1161 = vmatprep.subr.mxu0 0.0
    %1162 = vmatpush1.msra.mxu0 0.0
    %1163 = vmatprep.subr.mxu0 0.0
    %1164 = vmatpush1.msra.mxu0 0.0
    %1165 = vmatprep.subr.mxu0 0.0
    %1166 = vmatpush1.msra.mxu0 0.0
    %1167 = vmatprep.subr.mxu0 0.0
    %1168 = vmatpush1.msra.mxu0 0.0
    %1169 = vmatprep.subr.mxu0 0.0
    %1170 = vmatpush1.msra.mxu0 0.0
    %1171 = vmatprep.subr.mxu0 0.0
    %1172 = vmatpush1.msra.mxu0 0.0
    %1173 = vmatprep.subr.mxu0 0.0
    %1174 = vmatpush1.msra.mxu0 0.0
    %v1175 = vand.u32 %v694, 4294901760
    %v1176 = vsub.f32 %v694, %v1175
    %v1177 = vand.u32 %v1176, 4294901760
    %1178 = vmatprep.subr.mxu0 %v1177
    %v1179 = vand.u32 %v693, 4294901760
    %v1180 = vsub.f32 %v693, %v1179
    %v1181 = vand.u32 %v1180, 4294901760
    %1182 = vmatpush1.msra.mxu0 %v1181
    %v1183 = vand.u32 %v677, 4294901760
    %v1184 = vsub.f32 %v677, %v1183
    %v1185 = vand.u32 %v1184, 4294901760
    %1186 = vmatprep.subr.mxu0 %v1185
    %v1187 = vand.u32 %v676, 4294901760
    %v1188 = vsub.f32 %v676, %v1187
    %v1189 = vand.u32 %v1188, 4294901760
    %1190 = vmatpush1.msra.mxu0 %v1189
    %v1191 = vand.u32 %v660, 4294901760
    %v1192 = vsub.f32 %v660, %v1191
    %v1193 = vand.u32 %v1192, 4294901760
    %1194 = vmatprep.subr.mxu0 %v1193
    %v1195 = vand.u32 %v659, 4294901760
    %v1196 = vsub.f32 %v659, %v1195
    %v1197 = vand.u32 %v1196, 4294901760
    %1198 = vmatpush1.msra.mxu0 %v1197
    %v1199 = vand.u32 %v643, 4294901760
    %v1200 = vsub.f32 %v643, %v1199
    %v1201 = vand.u32 %v1200, 4294901760
    %1202 = vmatprep.subr.mxu0 %v1201
    %v1203 = vand.u32 %v642, 4294901760
    %v1204 = vsub.f32 %v642, %v1203
    %v1205 = vand.u32 %v1204, 4294901760
    %1206 = vmatpush1.msra.mxu0 %v1205
    %v1207 = vand.u32 %v626, 4294901760
    %v1208 = vsub.f32 %v626, %v1207
    %v1209 = vand.u32 %v1208, 4294901760
    %1210 = vmatprep.subr.mxu0 %v1209
    %v1211 = vand.u32 %v625, 4294901760
    %v1212 = vsub.f32 %v625, %v1211
    %v1213 = vand.u32 %v1212, 4294901760
    %1214 = vmatpush1.msra.mxu0 %v1213
    %v1215 = vand.u32 %v616, 4294901760
    %v1216 = vsub.f32 %v616, %v1215
    %v1217 = vand.u32 %v1216, 4294901760
    %1218 = vmatprep.subr.mxu0 %v1217
    %v1219 = vand.u32 %v615, 4294901760
    %v1220 = vsub.f32 %v615, %v1219
    %v1221 = vand.u32 %v1220, 4294901760
    %1222 = vmatpush1.msra.mxu0 %v1221
    %v1223 = vand.u32 %v599, 4294901760
    %v1224 = vsub.f32 %v599, %v1223
    %v1225 = vand.u32 %v1224, 4294901760
    %1226 = vmatprep.subr.mxu0 %v1225
    %v1227 = vand.u32 %v598, 4294901760
    %v1228 = vsub.f32 %v598, %v1227
    %v1229 = vand.u32 %v1228, 4294901760
    %1230 = vmatpush1.msra.mxu0 %v1229
    %v1231 = vand.u32 %v582, 4294901760
    %v1232 = vsub.f32 %v582, %v1231
    %v1233 = vand.u32 %v1232, 4294901760
    %1234 = vmatprep.subr.mxu0 %v1233
    %v1235 = vand.u32 %v581, 4294901760
    %v1236 = vsub.f32 %v581, %v1235
    %v1237 = vand.u32 %v1236, 4294901760
    %1238 = vmatpush1.msra.mxu0 %v1237
    %v1239 = vand.u32 %v565, 4294901760
    %v1240 = vsub.f32 %v565, %v1239
    %v1241 = vand.u32 %v1240, 4294901760
    %1242 = vmatprep.subr.mxu0 %v1241
    %v1243 = vand.u32 %v564, 4294901760
    %v1244 = vsub.f32 %v564, %v1243
    %v1245 = vand.u32 %v1244, 4294901760
    %1246 = vmatpush1.msra.mxu0 %v1245
    %1247 = vmatprep.subr.mxu0 0.0
    %1248 = vmatpush2.msra.mxu0 0.0
    %1249 = vmatprep.subr.mxu0 0.0
    %1250 = vmatpush2.msra.mxu0 0.0
    %1251 = vmatprep.subr.mxu0 0.0
    %1252 = vmatpush2.msra.mxu0 0.0
    %1253 = vmatprep.subr.mxu0 0.0
    %1254 = vmatpush2.msra.mxu0 0.0
    %1255 = vmatprep.subr.mxu0 0.0
    %1256 = vmatpush2.msra.mxu0 0.0
    %1257 = vmatprep.subr.mxu0 0.0
    %1258 = vmatpush2.msra.mxu0 0.0
    %1259 = vmatprep.subr.mxu0 0.0
    %1260 = vmatpush2.msra.mxu0 0.0
    %1261 = vmatprep.subr.mxu0 0.0
    %1262 = vmatpush2.msra.mxu0 0.0
    %1263 = vmatprep.subr.mxu0 0.0
    %1264 = vmatpush2.msra.mxu0 0.0
    %1265 = vmatprep.subr.mxu0 0.0
    %1266 = vmatpush2.msra.mxu0 0.0
    %1267 = vmatprep.subr.mxu0 0.0
    %1268 = vmatpush2.msra.mxu0 0.0
    %1269 = vmatprep.subr.mxu0 0.0
    %1270 = vmatpush2.msra.mxu0 0.0
    %1271 = vmatprep.subr.mxu0 0.0
    %1272 = vmatpush2.msra.mxu0 0.0
    %1273 = vmatprep.subr.mxu0 0.0
    %1274 = vmatpush2.msra.mxu0 0.0
    %1275 = vmatprep.subr.mxu0 0.0
    %1276 = vmatpush2.msra.mxu0 0.0
    %1277 = vmatprep.subr.mxu0 0.0
    %1278 = vmatpush2.msra.mxu0 0.0
    %1279 = vmatprep.mubr.f32.mxu0 0.0
    %v1280 = vand.u32 %v702, 4294901760
    %1281 = vmatmul.mubr.f32.gmra.mxu0 %v1280
    %v1282 = vpop.f32.mrf.mxu0
    %v1283 = vadd.f32 %v1157, %v1282
    %v1284 = vpop.f32.mrf.mxu0
    %v1285 = vadd.f32 %v1159, %v1284
    %1286 = vdwg.mxu0
    %1287 = vmatprep.subr.mxu0 0.0
    %1288 = vmatpush1.msra.mxu0 0.0
    %1289 = vmatprep.subr.mxu0 0.0
    %1290 = vmatpush1.msra.mxu0 0.0
    %1291 = vmatprep.subr.mxu0 0.0
    %1292 = vmatpush1.msra.mxu0 0.0
    %1293 = vmatprep.subr.mxu0 0.0
    %1294 = vmatpush1.msra.mxu0 0.0
    %1295 = vmatprep.subr.mxu0 0.0
    %1296 = vmatpush1.msra.mxu0 0.0
    %1297 = vmatprep.subr.mxu0 0.0
    %1298 = vmatpush1.msra.mxu0 0.0
    %1299 = vmatprep.subr.mxu0 0.0
    %1300 = vmatpush1.msra.mxu0 0.0
    %v1301 = vand.u32 %v694, 4294901760
    %1302 = vmatprep.subr.mxu0 %v1301
    %v1303 = vand.u32 %v693, 4294901760
    %1304 = vmatpush1.msra.mxu0 %v1303
    %v1305 = vand.u32 %v677, 4294901760
    %1306 = vmatprep.subr.mxu0 %v1305
    %v1307 = vand.u32 %v676, 4294901760
    %1308 = vmatpush1.msra.mxu0 %v1307
    %v1309 = vand.u32 %v660, 4294901760
    %1310 = vmatprep.subr.mxu0 %v1309
    %v1311 = vand.u32 %v659, 4294901760
    %1312 = vmatpush1.msra.mxu0 %v1311
    %v1313 = vand.u32 %v643, 4294901760
    %1314 = vmatprep.subr.mxu0 %v1313
    %v1315 = vand.u32 %v642, 4294901760
    %1316 = vmatpush1.msra.mxu0 %v1315
    %v1317 = vand.u32 %v626, 4294901760
    %1318 = vmatprep.subr.mxu0 %v1317
    %v1319 = vand.u32 %v625, 4294901760
    %1320 = vmatpush1.msra.mxu0 %v1319
    %v1321 = vand.u32 %v616, 4294901760
    %1322 = vmatprep.subr.mxu0 %v1321
    %v1323 = vand.u32 %v615, 4294901760
    %1324 = vmatpush1.msra.mxu0 %v1323
    %v1325 = vand.u32 %v599, 4294901760
    %1326 = vmatprep.subr.mxu0 %v1325
    %v1327 = vand.u32 %v598, 4294901760
    %1328 = vmatpush1.msra.mxu0 %v1327
    %v1329 = vand.u32 %v582, 4294901760
    %1330 = vmatprep.subr.mxu0 %v1329
    %v1331 = vand.u32 %v581, 4294901760
    %1332 = vmatpush1.msra.mxu0 %v1331
    %v1333 = vand.u32 %v565, 4294901760
    %1334 = vmatprep.subr.mxu0 %v1333
    %v1335 = vand.u32 %v564, 4294901760
    %1336 = vmatpush1.msra.mxu0 %v1335
    %1337 = vmatprep.subr.mxu0 0.0
    %1338 = vmatpush2.msra.mxu0 0.0
    %1339 = vmatprep.subr.mxu0 0.0
    %1340 = vmatpush2.msra.mxu0 0.0
    %1341 = vmatprep.subr.mxu0 0.0
    %1342 = vmatpush2.msra.mxu0 0.0
    %1343 = vmatprep.subr.mxu0 0.0
    %1344 = vmatpush2.msra.mxu0 0.0
    %1345 = vmatprep.subr.mxu0 0.0
    %1346 = vmatpush2.msra.mxu0 0.0
    %1347 = vmatprep.subr.mxu0 0.0
    %1348 = vmatpush2.msra.mxu0 0.0
    %1349 = vmatprep.subr.mxu0 0.0
    %1350 = vmatpush2.msra.mxu0 0.0
    %1351 = vmatprep.subr.mxu0 0.0
    %1352 = vmatpush2.msra.mxu0 0.0
    %1353 = vmatprep.subr.mxu0 0.0
    %1354 = vmatpush2.msra.mxu0 0.0
    %1355 = vmatprep.subr.mxu0 0.0
    %1356 = vmatpush2.msra.mxu0 0.0
    %1357 = vmatprep.subr.mxu0 0.0
    %1358 = vmatpush2.msra.mxu0 0.0
    %1359 = vmatprep.subr.mxu0 0.0
    %1360 = vmatpush2.msra.mxu0 0.0
    %1361 = vmatprep.subr.mxu0 0.0
    %1362 = vmatpush2.msra.mxu0 0.0
    %1363 = vmatprep.subr.mxu0 0.0
    %1364 = vmatpush2.msra.mxu0 0.0
    %1365 = vmatprep.subr.mxu0 0.0
    %1366 = vmatpush2.msra.mxu0 0.0
    %1367 = vmatprep.subr.mxu0 0.0
    %1368 = vmatpush2.msra.mxu0 0.0
    %1369 = vmatprep.mubr.f32.mxu0 0.0
    %v1370 = vand.u32 %v702, 4294901760
    %1371 = vmatmul.mubr.f32.gmra.mxu0 %v1370
    %v1372 = vpop.f32.mrf.mxu0
    %v1373 = vadd.f32 %v1283, %v1372
    %v1374 = vpop.f32.mrf.mxu0
    %v1375 = vadd.f32 %v1285, %v1374
    %1376 = vdwg.mxu0
    %v1377 = vadd.f32 %v1373, %v61
    %v1378 = vadd.f32 %v1375, %v62
    %v1379 = vmax.f32 %v1377, 0.0
    %v1380 = vmax.f32 %v1378, 0.0
    %1381 = vst [vmem:[#allocation8] sm:$0xff] %v1379
    %1382 = vst [vmem:[#allocation8 + $0x8] sm:$0xff] %v1380
    // Predicated region
    $region38: #{tpu_custom_call.1} parent=1 // pred_check
      _
    $region39: #{tpu_custom_call.1} parent=1 // pred_check_branch
      %1384 = sbr.rel (0) target = $region41
    $region40: #{tpu_custom_call.1} parent=1 // pred_region
      %s1386 = ssub.s32 256, 256
      %1387 = vsyncadd [#allocation4], %s1386
      %s1389 = sshll.u32 [#allocation8], 4
      %s1390 = int_to_ptr.vmem [resolvable:$true] %s1389
      %1392 = dma.vmem_to_hbm [thread:$0]  %s1390, 256, %s6, [#allocation4]
    $region41: #{tpu_custom_call.1} parent=1 // pred_fallthru
      _
    // Predicated region
    $region42: #{tpu_custom_call.1} parent=1 // pred_check
      _
    $region43: #{tpu_custom_call.1} parent=1 // pred_check_branch
      %1394 = sbr.rel (0) target = $region45
    $region44: #{tpu_custom_call.1} parent=1 // pred_region
      %1395 = dma.done [#allocation4], 256
    $region45: #{tpu_custom_call.1} parent=1 // pred_fallthru
      _
    %1396 = vsyncpa [#allocation3], 1
    %1397 = vsyncpa [#allocation6], 1
    %1398 = vsyncpa [#allocation4], 1

</llo_original>
